<compile_context>
chip_gen: v7x
topology: tpu7x:2x2x1
jax: 0.10.0
libtpu: 0.0.40
codegen_flags: <defaults>
</compile_context>

<pallas_src>
import math

import jax
import jax.numpy as jnp
from jax.experimental import pallas as pl
from jax.experimental.pallas import tpu as pltpu

# ---- problem sizes (small, consistent with the module) ----------------------
S, B, E = 8, 2, 32          # seq_len, batch, embedding_dim
H = 4                       # num_heads
DH = E // H                 # head_dim
F = 64                      # feedforward_dim
EPS = 1e-5                  # nn.LayerNorm default eps
N = S * B                   # flattened tokens (row n = s*B + b)


# ---- in-kernel math helpers --------------------------------------------------
def _erf(x):
    # Abramowitz & Stegun 7.1.26 (|err| < 1.5e-7). Maps to VPU/EUP only; the
    # divide is routed to the EUP reciprocal so the long VPU chain shortens.
    a1, a2, a3, a4, a5 = 0.254829592, -0.284496736, 1.421413741, -1.453152027, 1.061405429
    p = 0.3275911
    s = jnp.where(x >= 0.0, 1.0, -1.0)
    ax = jnp.abs(x)
    t = pl.reciprocal(1.0 + p * ax, approx=True)
    poly = ((((a5 * t + a4) * t + a3) * t + a2) * t + a1) * t
    return s * (1.0 - poly * jnp.exp(-ax * ax))


def _gelu_exact(x):
    # nn.GELU() default (erf-based, not tanh approximation)
    return 0.5 * x * (1.0 + _erf(x * (1.0 / math.sqrt(2.0))))


def _layernorm(x, gamma, beta):
    mu = jnp.mean(x, axis=-1, keepdims=True)
    var = jnp.mean(jnp.square(x - mu), axis=-1, keepdims=True)
    return (x - mu) * jax.lax.rsqrt(var + EPS) * gamma + beta


# ---- fused encoder-layer kernel ----------------------------------------------
def encoder_layer_kernel(x_ref, vec_ref, wqkv_ref, woh_ref, w1_ref, w2_ref, o_ref):
    x = x_ref[...]                         # (N, E) f32, token-major

    # static slices of the single packed (8, 128) parameter tile
    g1 = vec_ref[0:1, :E]
    be1 = vec_ref[1:2, :E]
    bqkv = vec_ref[2:3, :3 * E]
    bo = vec_ref[3:4, :E]
    g2 = vec_ref[4:5, :E]
    be2 = vec_ref[5:6, :E]
    b1 = vec_ref[6:7, :F]
    b2 = vec_ref[7:8, :E]

    # batch block-diagonal attention bias built in-kernel (tokens attend only
    # within their own batch; row n = s*B + b so batch id = n % B).
    row_b = jax.lax.broadcasted_iota(jnp.int32, (N, N), 0) % B
    col_b = jax.lax.broadcasted_iota(jnp.int32, (N, N), 1) % B
    neg = jnp.where(row_b == col_b, 0.0, -1e30).astype(jnp.float32)
    # TODO(synk): fold an optional user attention mask into `neg` here
    # (mask == 0 -> -10000.0), keeping the add in f32.

    # --- LayerNorm1 + fused QKV projection (one bf16 MXU push, f32 acc) ------
    n1 = _layernorm(x, g1, be1)
    qkv = jnp.dot(n1.astype(jnp.bfloat16), wqkv_ref[...],
                  preferred_element_type=jnp.float32) + bqkv        # (N, 3E) f32
    qkv_bf = qkv.astype(jnp.bfloat16)      # single cast, sliced per head below

    # --- attention: out-projection folded into the head loop (no concat) -----
    # (static Python unroll; fine at H=4 — switch to an in-place accumulator /
    #  fori_loop(unroll=True) before scaling H or N.)
    acc = jnp.zeros((N, E), jnp.float32)
    for h in range(H):
        q = qkv_bf[:, h * DH:(h + 1) * DH]                 # 1/sqrt(DH) pre-folded
        k = qkv_bf[:, E + h * DH:E + (h + 1) * DH]
        v = qkv_bf[:, 2 * E + h * DH:2 * E + (h + 1) * DH]
        s = jax.lax.dot_general(q, k, (((1,), (1,)), ((), ())),
                                preferred_element_type=jnp.float32) + neg
        m = jnp.max(s, axis=-1, keepdims=True)
        e = jnp.exp(s - m)
        p = e * pl.reciprocal(jnp.sum(e, axis=-1, keepdims=True), approx=True)
        pv = jnp.dot(p.astype(jnp.bfloat16), v, preferred_element_type=jnp.float32)
        acc = acc + jnp.dot(pv.astype(jnp.bfloat16), woh_ref[h],
                            preferred_element_type=jnp.float32)
    x1 = x + acc + bo

    # --- LayerNorm2 + FFN (erf-GELU) + residual --------------------------------
    n2 = _layernorm(x1, g2, be2)
    hdn = _gelu_exact(jnp.dot(n2.astype(jnp.bfloat16), w1_ref[...],
                              preferred_element_type=jnp.float32) + b1)
    o_ref[...] = x1 + jnp.dot(hdn.astype(jnp.bfloat16), w2_ref[...],
                              preferred_element_type=jnp.float32) + b2


# ---- one-time host-side parameter prep (hoisted out of the hot path) ----------
def prepare_params(p):
    scale = 1.0 / math.sqrt(DH)
    # fuse Q/K/V into one (E, 3E) weight; fold the softmax scale into Q columns
    wqkv = jnp.concatenate([p["wq"] * scale, p["wk"], p["wv"]], axis=1)   # (E, 3E)
    bqkv = jnp.concatenate([p["bq"] * scale, p["bk"], p["bv"]], axis=1)   # (1, 3E)

    # pack the 8 tiny per-channel vectors into one (8, 128) f32 tile (one vreg,
    # one DMA); widths: E,E,3E,E,E,E,F,E  all <= 128.
    rows = [p["g1"], p["be1"], bqkv, p["bo"], p["g2"], p["be2"], p["b1"], p["b2"]]
    vec = jnp.zeros((8, 128), jnp.float32)
    for i, r in enumerate(rows):
        r = jnp.ravel(r).astype(jnp.float32)
        vec = vec.at[i, :r.shape[0]].set(r)

    return {
        "vec": vec,
        "wqkv": wqkv.astype(jnp.bfloat16),
        # out-projection pre-split by head: (H, DH, E) -> per-head slab is a
        # clean leading-dim index inside the kernel.
        "woh": p["wo"].reshape(H, DH, E).astype(jnp.bfloat16),
        "w1": p["w1"].astype(jnp.bfloat16),
        "w2": p["w2"].astype(jnp.bfloat16),
    }


# ---- jitted wrapper ------------------------------------------------------------
@jax.jit
def transformer_encoder_layer(x, pp):
    # free reshape (no transpose): (S, B, E) -> (N, E), row n = s*B + b
    x2d = x.reshape(N, E)
    vmem = pl.BlockSpec(memory_space=pltpu.MemorySpace.VMEM)   # whole array in VMEM
    out2d = pl.pallas_call(
        encoder_layer_kernel,
        in_specs=[vmem] * 6,
        out_specs=vmem,
        out_shape=jax.ShapeDtypeStruct((N, E), jnp.float32),
    )(x2d, pp["vec"], pp["wqkv"], pp["woh"], pp["w1"], pp["w2"])
    return out2d.reshape(S, B, E)


# ---- pure-JAX reference (for sanity check) ------------------------------------
def reference(x, p):
    def ln(t, g, b):
        mu = t.mean(-1, keepdims=True)
        var = ((t - mu) ** 2).mean(-1, keepdims=True)
        return (t - mu) / jnp.sqrt(var + EPS) * g + b

    x2d = x.reshape(N, E)
    n1 = ln(x2d, p["g1"], p["be1"])
    q = (n1 @ p["wq"] + p["bq"]).reshape(S, B, H, DH).transpose(1, 2, 0, 3)
    k = (n1 @ p["wk"] + p["bk"]).reshape(S, B, H, DH).transpose(1, 2, 0, 3)
    v = (n1 @ p["wv"] + p["bv"]).reshape(S, B, H, DH).transpose(1, 2, 0, 3)
    scores = jnp.einsum("bhsd,bhtd->bhst", q, k) / math.sqrt(DH)
    w = jax.nn.softmax(scores, axis=-1)
    a = jnp.einsum("bhst,bhtd->bhsd", w, v).transpose(2, 0, 1, 3).reshape(N, E)
    x1 = x2d + (a @ p["wo"] + p["bo"])
    n2 = ln(x1, p["g2"], p["be2"])
    h = jax.nn.gelu(n2 @ p["w1"] + p["b1"], approximate=False)
    out = x1 + (h @ p["w2"] + p["b2"])
    return out.reshape(S, B, E)


if __name__ == "__main__":
    key = jax.random.PRNGKey(0)
    ks = jax.random.split(key, 16)
    sd_e = 1.0 / math.sqrt(E)
    sd_f = 1.0 / math.sqrt(F)

    params = {
        "wq": jax.random.normal(ks[1], (E, E), jnp.float32) * sd_e,
        "bq": jax.random.normal(ks[2], (1, E), jnp.float32) * 0.02,
        "wk": jax.random.normal(ks[3], (E, E), jnp.float32) * sd_e,
        "bk": jax.random.normal(ks[4], (1, E), jnp.float32) * 0.02,
        "wv": jax.random.normal(ks[5], (E, E), jnp.float32) * sd_e,
        "bv": jax.random.normal(ks[6], (1, E), jnp.float32) * 0.02,
        "wo": jax.random.normal(ks[7], (E, E), jnp.float32) * sd_e,
        "bo": jax.random.normal(ks[8], (1, E), jnp.float32) * 0.02,
        "g1": jnp.ones((1, E), jnp.float32),
        "be1": jnp.zeros((1, E), jnp.float32),
        "g2": jnp.ones((1, E), jnp.float32),
        "be2": jnp.zeros((1, E), jnp.float32),
        "w1": jax.random.normal(ks[9], (E, F), jnp.float32) * sd_e,
        "b1": jax.random.normal(ks[10], (1, F), jnp.float32) * 0.02,
        "w2": jax.random.normal(ks[11], (F, E), jnp.float32) * sd_f,
        "b2": jax.random.normal(ks[12], (1, E), jnp.float32) * 0.02,
    }

    x = jax.random.normal(ks[0], (S, B, E), jnp.float32)

    pp = prepare_params(params)             # one-time prep, outside the hot path
    y = transformer_encoder_layer(x, pp)    # jitted wrapper -> single pallas_call
    jax.block_until_ready(y)

    y_ref = reference(x, params)
    assert y.shape == (S, B, E)
    # Tolerance is intentionally loose: bf16 MXU operands (f32 accumulation),
    # approx EUP reciprocal in softmax/erf, and the A&S erf polynomial together
    # give ~1e-2-scale deviations vs the f32 exact-GELU reference.
    assert jnp.allclose(y, y_ref, atol=3e-2, rtol=3e-2), "mismatch vs reference"

    print("KERNEL_OK")
</pallas_src>

<mosaic_0001>
module attributes {stable_mosaic.version = 11 : i64} {
  func.func @encoder_layer_kernel(%arg0: memref<16x32xf32, #tpu.memory_space<vmem>>, %arg1: memref<8x128xf32, #tpu.memory_space<vmem>>, %arg2: memref<32x96xbf16, #tpu.memory_space<vmem>>, %arg3: memref<4x8x32xbf16, #tpu.memory_space<vmem>>, %arg4: memref<32x64xbf16, #tpu.memory_space<vmem>>, %arg5: memref<64x32xbf16, #tpu.memory_space<vmem>>, %arg6: memref<16x32xf32, #tpu.memory_space<vmem>>) attributes {dimension_semantics = [], scalar_prefetch = 0 : i64, scratch_operands = 0 : i64, tpu.core_type = #tpu.core_type<tc>} {
    %c0 = arith.constant 0 : index
    %c0_0 = arith.constant 0 : index
    %0 = vector.load %arg0[%c0, %c0_0] : memref<16x32xf32, #tpu.memory_space<vmem>>, vector<16x32xf32>
    %c0_1 = arith.constant 0 : index
    %c0_2 = arith.constant 0 : index
    %1 = vector.load %arg1[%c0_1, %c0_2] : memref<8x128xf32, #tpu.memory_space<vmem>>, vector<1x32xf32>
    %c1 = arith.constant 1 : index
    %c0_3 = arith.constant 0 : index
    %2 = vector.load %arg1[%c1, %c0_3] : memref<8x128xf32, #tpu.memory_space<vmem>>, vector<1x32xf32>
    %c2 = arith.constant 2 : index
    %c0_4 = arith.constant 0 : index
    %3 = vector.load %arg1[%c2, %c0_4] : memref<8x128xf32, #tpu.memory_space<vmem>>, vector<1x96xf32>
    %c3 = arith.constant 3 : index
    %c0_5 = arith.constant 0 : index
    %4 = vector.load %arg1[%c3, %c0_5] : memref<8x128xf32, #tpu.memory_space<vmem>>, vector<1x32xf32>
    %c4 = arith.constant 4 : index
    %c0_6 = arith.constant 0 : index
    %5 = vector.load %arg1[%c4, %c0_6] : memref<8x128xf32, #tpu.memory_space<vmem>>, vector<1x32xf32>
    %c5 = arith.constant 5 : index
    %c0_7 = arith.constant 0 : index
    %6 = vector.load %arg1[%c5, %c0_7] : memref<8x128xf32, #tpu.memory_space<vmem>>, vector<1x32xf32>
    %c6 = arith.constant 6 : index
    %c0_8 = arith.constant 0 : index
    %7 = vector.load %arg1[%c6, %c0_8] : memref<8x128xf32, #tpu.memory_space<vmem>>, vector<1x64xf32>
    %c7 = arith.constant 7 : index
    %c0_9 = arith.constant 0 : index
    %8 = vector.load %arg1[%c7, %c0_9] : memref<8x128xf32, #tpu.memory_space<vmem>>, vector<1x32xf32>
    %9 = tpu.iota {dimensions = array<i32: 0>} : vector<16x16xi32>
    %c2_i32 = arith.constant 2 : i32
    %c0_i32 = arith.constant 0 : i32
    %10 = arith.cmpi eq, %c2_i32, %c0_i32 : i32
    %c1_i32 = arith.constant 1 : i32
    %11 = arith.select %10, %c1_i32, %c2_i32 : i32
    %12 = vector.broadcast %11 : i32 to vector<16x16xi32>
    %13 = arith.remsi %9, %12 : vector<16x16xi32>
    %c0_i32_10 = arith.constant 0 : i32
    %14 = vector.broadcast %c0_i32_10 : i32 to vector<16x16xi32>
    %15 = arith.cmpi ne, %13, %14 : vector<16x16xi32>
    %c0_i32_11 = arith.constant 0 : i32
    %16 = vector.broadcast %c0_i32_11 : i32 to vector<16x16xi32>
    %17 = arith.cmpi slt, %13, %16 : vector<16x16xi32>
    %c0_i32_12 = arith.constant 0 : i32
    %18 = arith.cmpi slt, %11, %c0_i32_12 : i32
    %19 = vector.broadcast %18 : i1 to vector<16x16xi1>
    %20 = vector.broadcast %19 : vector<16x16xi1> to vector<16x16xi1>
    %21 = arith.xori %17, %20 : vector<16x16xi1>
    %22 = arith.andi %21, %15 : vector<16x16xi1>
    %23 = vector.broadcast %11 : i32 to vector<16x16xi32>
    %24 = arith.addi %13, %23 : vector<16x16xi32>
    %25 = arith.select %22, %24, %13 : vector<16x16xi1>, vector<16x16xi32>
    %26 = tpu.iota {dimensions = array<i32: 1>} : vector<16x16xi32>
    %c2_i32_13 = arith.constant 2 : i32
    %c0_i32_14 = arith.constant 0 : i32
    %27 = arith.cmpi eq, %c2_i32_13, %c0_i32_14 : i32
    %c1_i32_15 = arith.constant 1 : i32
    %28 = arith.select %27, %c1_i32_15, %c2_i32_13 : i32
    %29 = vector.broadcast %28 : i32 to vector<16x16xi32>
    %30 = arith.remsi %26, %29 : vector<16x16xi32>
    %c0_i32_16 = arith.constant 0 : i32
    %31 = vector.broadcast %c0_i32_16 : i32 to vector<16x16xi32>
    %32 = arith.cmpi ne, %30, %31 : vector<16x16xi32>
    %c0_i32_17 = arith.constant 0 : i32
    %33 = vector.broadcast %c0_i32_17 : i32 to vector<16x16xi32>
    %34 = arith.cmpi slt, %30, %33 : vector<16x16xi32>
    %c0_i32_18 = arith.constant 0 : i32
    %35 = arith.cmpi slt, %28, %c0_i32_18 : i32
    %36 = vector.broadcast %35 : i1 to vector<16x16xi1>
    %37 = vector.broadcast %36 : vector<16x16xi1> to vector<16x16xi1>
    %38 = arith.xori %34, %37 : vector<16x16xi1>
    %39 = arith.andi %38, %32 : vector<16x16xi1>
    %40 = vector.broadcast %28 : i32 to vector<16x16xi32>
    %41 = arith.addi %30, %40 : vector<16x16xi32>
    %42 = arith.select %39, %41, %30 : vector<16x16xi1>, vector<16x16xi32>
    %43 = arith.cmpi eq, %25, %42 : vector<16x16xi32>
    %cst = arith.constant 0.000000e+00 : f32
    %cst_19 = arith.constant -1.000000e+30 : f32
    %44 = vector.broadcast %cst : f32 to vector<16x16xf32>
    %45 = vector.broadcast %cst_19 : f32 to vector<16x16xf32>
    %46 = arith.select %43, %44, %45 : vector<16x16xi1>, vector<16x16xf32>
    %cst_20 = arith.constant dense<0.000000e+00> : vector<16xf32>
    %47 = vector.multi_reduction <add>, %0, %cst_20 [1] : vector<16x32xf32> to vector<16xf32>
    %48 = vector.shape_cast %47 : vector<16xf32> to vector<16x1xf32>
    %cst_21 = arith.constant 3.200000e+01 : f32
    %49 = vector.broadcast %cst_21 : f32 to vector<16x1xf32>
    %50 = arith.divf %48, %49 : vector<16x1xf32>
    %51 = vector.broadcast %50 : vector<16x1xf32> to vector<16x32xf32>
    %52 = arith.subf %0, %51 : vector<16x32xf32>
    %53 = arith.mulf %52, %52 : vector<16x32xf32>
    %cst_22 = arith.constant dense<0.000000e+00> : vector<16xf32>
    %54 = vector.multi_reduction <add>, %53, %cst_22 [1] : vector<16x32xf32> to vector<16xf32>
    %55 = vector.shape_cast %54 : vector<16xf32> to vector<16x1xf32>
    %cst_23 = arith.constant 3.200000e+01 : f32
    %56 = vector.broadcast %cst_23 : f32 to vector<16x1xf32>
    %57 = arith.divf %55, %56 : vector<16x1xf32>
    %58 = vector.broadcast %50 : vector<16x1xf32> to vector<16x32xf32>
    %59 = arith.subf %0, %58 : vector<16x32xf32>
    %cst_24 = arith.constant 9.99999974E-6 : f32
    %60 = vector.broadcast %cst_24 : f32 to vector<16x1xf32>
    %61 = arith.addf %57, %60 : vector<16x1xf32>
    %62 = math.rsqrt %61 : vector<16x1xf32>
    %63 = vector.broadcast %62 : vector<16x1xf32> to vector<16x32xf32>
    %64 = arith.mulf %59, %63 : vector<16x32xf32>
    %65 = vector.broadcast %1 : vector<1x32xf32> to vector<16x32xf32>
    %66 = arith.mulf %64, %65 : vector<16x32xf32>
    %67 = vector.broadcast %2 : vector<1x32xf32> to vector<16x32xf32>
    %68 = arith.addf %66, %67 : vector<16x32xf32>
    %69 = arith.truncf %68 : vector<16x32xf32> to vector<16x32xbf16>
    %c0_25 = arith.constant 0 : index
    %c0_26 = arith.constant 0 : index
    %70 = vector.load %arg2[%c0_25, %c0_26] : memref<32x96xbf16, #tpu.memory_space<vmem>>, vector<32x96xbf16>
    %cst_27 = arith.constant dense<0.000000e+00> : vector<16x96xf32>
    %71 = tpu.matmul %69, %70, %cst_27 {dimension_numbers = #tpu.dot_dimension_numbers<[1], [0], [0], [1], [0, 0, 1, 1], [], []>} : vector<16x32xbf16>, vector<32x96xbf16>, vector<16x96xf32> -> vector<16x96xf32>
    %72 = vector.broadcast %3 : vector<1x96xf32> to vector<16x96xf32>
    %73 = arith.addf %71, %72 : vector<16x96xf32>
    %74 = arith.truncf %73 : vector<16x96xf32> to vector<16x96xbf16>
    %cst_28 = arith.constant 0.000000e+00 : f32
    %75 = vector.broadcast %cst_28 : f32 to vector<16x32xf32>
    %76 = vector.extract_strided_slice %74 {offsets = [0, 0], sizes = [16, 8], strides = [1, 1]} : vector<16x96xbf16> to vector<16x8xbf16>
    %77 = vector.extract_strided_slice %74 {offsets = [0, 32], sizes = [16, 8], strides = [1, 1]} : vector<16x96xbf16> to vector<16x8xbf16>
    %78 = vector.extract_strided_slice %74 {offsets = [0, 64], sizes = [16, 8], strides = [1, 1]} : vector<16x96xbf16> to vector<16x8xbf16>
    %cst_29 = arith.constant dense<0.000000e+00> : vector<16x16xf32>
    %79 = tpu.matmul %76, %77, %cst_29 {dimension_numbers = #tpu.dot_dimension_numbers<[1], [1], [0], [0], [0, 0, 1, 0], [], []>} : vector<16x8xbf16>, vector<16x8xbf16>, vector<16x16xf32> -> vector<16x16xf32>
    %80 = arith.addf %79, %46 : vector<16x16xf32>
    %cst_30 = arith.constant dense<0xFF800000> : vector<16xf32>
    %81 = vector.multi_reduction <maximumf>, %80, %cst_30 [1] : vector<16x16xf32> to vector<16xf32>
    %82 = vector.shape_cast %81 : vector<16xf32> to vector<16x1xf32>
    %83 = vector.broadcast %82 : vector<16x1xf32> to vector<16x16xf32>
    %84 = arith.subf %80, %83 : vector<16x16xf32>
    %85 = math.exp %84 : vector<16x16xf32>
    %cst_31 = arith.constant dense<0.000000e+00> : vector<16xf32>
    %86 = vector.multi_reduction <add>, %85, %cst_31 [1] : vector<16x16xf32> to vector<16xf32>
    %87 = vector.shape_cast %86 : vector<16xf32> to vector<16x1xf32>
    %88 = tpu.reciprocal %87 {approx = true} : vector<16x1xf32> -> vector<16x1xf32>
    %89 = vector.broadcast %88 : vector<16x1xf32> to vector<16x16xf32>
    %90 = arith.mulf %85, %89 : vector<16x16xf32>
    %91 = arith.truncf %90 : vector<16x16xf32> to vector<16x16xbf16>
    %cst_32 = arith.constant dense<0.000000e+00> : vector<16x8xf32>
    %92 = tpu.matmul %91, %78, %cst_32 {dimension_numbers = #tpu.dot_dimension_numbers<[1], [0], [0], [1], [0, 0, 1, 1], [], []>} : vector<16x16xbf16>, vector<16x8xbf16>, vector<16x8xf32> -> vector<16x8xf32>
    %93 = arith.truncf %92 : vector<16x8xf32> to vector<16x8xbf16>
    %c0_33 = arith.constant 0 : index
    %c0_34 = arith.constant 0 : index
    %c0_35 = arith.constant 0 : index
    %94 = vector.load %arg3[%c0_33, %c0_34, %c0_35] : memref<4x8x32xbf16, #tpu.memory_space<vmem>>, vector<1x8x32xbf16>
    %95 = vector.shape_cast %94 : vector<1x8x32xbf16> to vector<8x32xbf16>
    %cst_36 = arith.constant dense<0.000000e+00> : vector<16x32xf32>
    %96 = tpu.matmul %93, %95, %cst_36 {dimension_numbers = #tpu.dot_dimension_numbers<[1], [0], [0], [1], [0, 0, 1, 1], [], []>} : vector<16x8xbf16>, vector<8x32xbf16>, vector<16x32xf32> -> vector<16x32xf32>
    %97 = arith.addf %75, %96 : vector<16x32xf32>
    %98 = vector.extract_strided_slice %74 {offsets = [0, 8], sizes = [16, 8], strides = [1, 1]} : vector<16x96xbf16> to vector<16x8xbf16>
    %99 = vector.extract_strided_slice %74 {offsets = [0, 40], sizes = [16, 8], strides = [1, 1]} : vector<16x96xbf16> to vector<16x8xbf16>
    %100 = vector.extract_strided_slice %74 {offsets = [0, 72], sizes = [16, 8], strides = [1, 1]} : vector<16x96xbf16> to vector<16x8xbf16>
    %cst_37 = arith.constant dense<0.000000e+00> : vector<16x16xf32>
    %101 = tpu.matmul %98, %99, %cst_37 {dimension_numbers = #tpu.dot_dimension_numbers<[1], [1], [0], [0], [0, 0, 1, 0], [], []>} : vector<16x8xbf16>, vector<16x8xbf16>, vector<16x16xf32> -> vector<16x16xf32>
    %102 = arith.addf %101, %46 : vector<16x16xf32>
    %cst_38 = arith.constant dense<0xFF800000> : vector<16xf32>
    %103 = vector.multi_reduction <maximumf>, %102, %cst_38 [1] : vector<16x16xf32> to vector<16xf32>
    %104 = vector.shape_cast %103 : vector<16xf32> to vector<16x1xf32>
    %105 = vector.broadcast %104 : vector<16x1xf32> to vector<16x16xf32>
    %106 = arith.subf %102, %105 : vector<16x16xf32>
    %107 = math.exp %106 : vector<16x16xf32>
    %cst_39 = arith.constant dense<0.000000e+00> : vector<16xf32>
    %108 = vector.multi_reduction <add>, %107, %cst_39 [1] : vector<16x16xf32> to vector<16xf32>
    %109 = vector.shape_cast %108 : vector<16xf32> to vector<16x1xf32>
    %110 = tpu.reciprocal %109 {approx = true} : vector<16x1xf32> -> vector<16x1xf32>
    %111 = vector.broadcast %110 : vector<16x1xf32> to vector<16x16xf32>
    %112 = arith.mulf %107, %111 : vector<16x16xf32>
    %113 = arith.truncf %112 : vector<16x16xf32> to vector<16x16xbf16>
    %cst_40 = arith.constant dense<0.000000e+00> : vector<16x8xf32>
    %114 = tpu.matmul %113, %100, %cst_40 {dimension_numbers = #tpu.dot_dimension_numbers<[1], [0], [0], [1], [0, 0, 1, 1], [], []>} : vector<16x16xbf16>, vector<16x8xbf16>, vector<16x8xf32> -> vector<16x8xf32>
    %115 = arith.truncf %114 : vector<16x8xf32> to vector<16x8xbf16>
    %c1_41 = arith.constant 1 : index
    %c0_42 = arith.constant 0 : index
    %c0_43 = arith.constant 0 : index
    %116 = vector.load %arg3[%c1_41, %c0_42, %c0_43] : memref<4x8x32xbf16, #tpu.memory_space<vmem>>, vector<1x8x32xbf16>
    %117 = vector.shape_cast %116 : vector<1x8x32xbf16> to vector<8x32xbf16>
    %cst_44 = arith.constant dense<0.000000e+00> : vector<16x32xf32>
    %118 = tpu.matmul %115, %117, %cst_44 {dimension_numbers = #tpu.dot_dimension_numbers<[1], [0], [0], [1], [0, 0, 1, 1], [], []>} : vector<16x8xbf16>, vector<8x32xbf16>, vector<16x32xf32> -> vector<16x32xf32>
    %119 = arith.addf %97, %118 : vector<16x32xf32>
    %120 = vector.extract_strided_slice %74 {offsets = [0, 16], sizes = [16, 8], strides = [1, 1]} : vector<16x96xbf16> to vector<16x8xbf16>
    %121 = vector.extract_strided_slice %74 {offsets = [0, 48], sizes = [16, 8], strides = [1, 1]} : vector<16x96xbf16> to vector<16x8xbf16>
    %122 = vector.extract_strided_slice %74 {offsets = [0, 80], sizes = [16, 8], strides = [1, 1]} : vector<16x96xbf16> to vector<16x8xbf16>
    %cst_45 = arith.constant dense<0.000000e+00> : vector<16x16xf32>
    %123 = tpu.matmul %120, %121, %cst_45 {dimension_numbers = #tpu.dot_dimension_numbers<[1], [1], [0], [0], [0, 0, 1, 0], [], []>} : vector<16x8xbf16>, vector<16x8xbf16>, vector<16x16xf32> -> vector<16x16xf32>
    %124 = arith.addf %123, %46 : vector<16x16xf32>
    %cst_46 = arith.constant dense<0xFF800000> : vector<16xf32>
    %125 = vector.multi_reduction <maximumf>, %124, %cst_46 [1] : vector<16x16xf32> to vector<16xf32>
    %126 = vector.shape_cast %125 : vector<16xf32> to vector<16x1xf32>
    %127 = vector.broadcast %126 : vector<16x1xf32> to vector<16x16xf32>
    %128 = arith.subf %124, %127 : vector<16x16xf32>
    %129 = math.exp %128 : vector<16x16xf32>
    %cst_47 = arith.constant dense<0.000000e+00> : vector<16xf32>
    %130 = vector.multi_reduction <add>, %129, %cst_47 [1] : vector<16x16xf32> to vector<16xf32>
    %131 = vector.shape_cast %130 : vector<16xf32> to vector<16x1xf32>
    %132 = tpu.reciprocal %131 {approx = true} : vector<16x1xf32> -> vector<16x1xf32>
    %133 = vector.broadcast %132 : vector<16x1xf32> to vector<16x16xf32>
    %134 = arith.mulf %129, %133 : vector<16x16xf32>
    %135 = arith.truncf %134 : vector<16x16xf32> to vector<16x16xbf16>
    %cst_48 = arith.constant dense<0.000000e+00> : vector<16x8xf32>
    %136 = tpu.matmul %135, %122, %cst_48 {dimension_numbers = #tpu.dot_dimension_numbers<[1], [0], [0], [1], [0, 0, 1, 1], [], []>} : vector<16x16xbf16>, vector<16x8xbf16>, vector<16x8xf32> -> vector<16x8xf32>
    %137 = arith.truncf %136 : vector<16x8xf32> to vector<16x8xbf16>
    %c2_49 = arith.constant 2 : index
    %c0_50 = arith.constant 0 : index
    %c0_51 = arith.constant 0 : index
    %138 = vector.load %arg3[%c2_49, %c0_50, %c0_51] : memref<4x8x32xbf16, #tpu.memory_space<vmem>>, vector<1x8x32xbf16>
    %139 = vector.shape_cast %138 : vector<1x8x32xbf16> to vector<8x32xbf16>
    %cst_52 = arith.constant dense<0.000000e+00> : vector<16x32xf32>
    %140 = tpu.matmul %137, %139, %cst_52 {dimension_numbers = #tpu.dot_dimension_numbers<[1], [0], [0], [1], [0, 0, 1, 1], [], []>} : vector<16x8xbf16>, vector<8x32xbf16>, vector<16x32xf32> -> vector<16x32xf32>
    %141 = arith.addf %119, %140 : vector<16x32xf32>
    %142 = vector.extract_strided_slice %74 {offsets = [0, 24], sizes = [16, 8], strides = [1, 1]} : vector<16x96xbf16> to vector<16x8xbf16>
    %143 = vector.extract_strided_slice %74 {offsets = [0, 56], sizes = [16, 8], strides = [1, 1]} : vector<16x96xbf16> to vector<16x8xbf16>
    %144 = vector.extract_strided_slice %74 {offsets = [0, 88], sizes = [16, 8], strides = [1, 1]} : vector<16x96xbf16> to vector<16x8xbf16>
    %cst_53 = arith.constant dense<0.000000e+00> : vector<16x16xf32>
    %145 = tpu.matmul %142, %143, %cst_53 {dimension_numbers = #tpu.dot_dimension_numbers<[1], [1], [0], [0], [0, 0, 1, 0], [], []>} : vector<16x8xbf16>, vector<16x8xbf16>, vector<16x16xf32> -> vector<16x16xf32>
    %146 = arith.addf %145, %46 : vector<16x16xf32>
    %cst_54 = arith.constant dense<0xFF800000> : vector<16xf32>
    %147 = vector.multi_reduction <maximumf>, %146, %cst_54 [1] : vector<16x16xf32> to vector<16xf32>
    %148 = vector.shape_cast %147 : vector<16xf32> to vector<16x1xf32>
    %149 = vector.broadcast %148 : vector<16x1xf32> to vector<16x16xf32>
    %150 = arith.subf %146, %149 : vector<16x16xf32>
    %151 = math.exp %150 : vector<16x16xf32>
    %cst_55 = arith.constant dense<0.000000e+00> : vector<16xf32>
    %152 = vector.multi_reduction <add>, %151, %cst_55 [1] : vector<16x16xf32> to vector<16xf32>
    %153 = vector.shape_cast %152 : vector<16xf32> to vector<16x1xf32>
    %154 = tpu.reciprocal %153 {approx = true} : vector<16x1xf32> -> vector<16x1xf32>
    %155 = vector.broadcast %154 : vector<16x1xf32> to vector<16x16xf32>
    %156 = arith.mulf %151, %155 : vector<16x16xf32>
    %157 = arith.truncf %156 : vector<16x16xf32> to vector<16x16xbf16>
    %cst_56 = arith.constant dense<0.000000e+00> : vector<16x8xf32>
    %158 = tpu.matmul %157, %144, %cst_56 {dimension_numbers = #tpu.dot_dimension_numbers<[1], [0], [0], [1], [0, 0, 1, 1], [], []>} : vector<16x16xbf16>, vector<16x8xbf16>, vector<16x8xf32> -> vector<16x8xf32>
    %159 = arith.truncf %158 : vector<16x8xf32> to vector<16x8xbf16>
    %c3_57 = arith.constant 3 : index
    %c0_58 = arith.constant 0 : index
    %c0_59 = arith.constant 0 : index
    %160 = vector.load %arg3[%c3_57, %c0_58, %c0_59] : memref<4x8x32xbf16, #tpu.memory_space<vmem>>, vector<1x8x32xbf16>
    %161 = vector.shape_cast %160 : vector<1x8x32xbf16> to vector<8x32xbf16>
    %cst_60 = arith.constant dense<0.000000e+00> : vector<16x32xf32>
    %162 = tpu.matmul %159, %161, %cst_60 {dimension_numbers = #tpu.dot_dimension_numbers<[1], [0], [0], [1], [0, 0, 1, 1], [], []>} : vector<16x8xbf16>, vector<8x32xbf16>, vector<16x32xf32> -> vector<16x32xf32>
    %163 = arith.addf %141, %162 : vector<16x32xf32>
    %164 = arith.addf %0, %163 : vector<16x32xf32>
    %165 = vector.broadcast %4 : vector<1x32xf32> to vector<16x32xf32>
    %166 = arith.addf %164, %165 : vector<16x32xf32>
    %cst_61 = arith.constant dense<0.000000e+00> : vector<16xf32>
    %167 = vector.multi_reduction <add>, %166, %cst_61 [1] : vector<16x32xf32> to vector<16xf32>
    %168 = vector.shape_cast %167 : vector<16xf32> to vector<16x1xf32>
    %cst_62 = arith.constant 3.200000e+01 : f32
    %169 = vector.broadcast %cst_62 : f32 to vector<16x1xf32>
    %170 = arith.divf %168, %169 : vector<16x1xf32>
    %171 = vector.broadcast %170 : vector<16x1xf32> to vector<16x32xf32>
    %172 = arith.subf %166, %171 : vector<16x32xf32>
    %173 = arith.mulf %172, %172 : vector<16x32xf32>
    %cst_63 = arith.constant dense<0.000000e+00> : vector<16xf32>
    %174 = vector.multi_reduction <add>, %173, %cst_63 [1] : vector<16x32xf32> to vector<16xf32>
    %175 = vector.shape_cast %174 : vector<16xf32> to vector<16x1xf32>
    %cst_64 = arith.constant 3.200000e+01 : f32
    %176 = vector.broadcast %cst_64 : f32 to vector<16x1xf32>
    %177 = arith.divf %175, %176 : vector<16x1xf32>
    %178 = vector.broadcast %170 : vector<16x1xf32> to vector<16x32xf32>
    %179 = arith.subf %166, %178 : vector<16x32xf32>
    %cst_65 = arith.constant 9.99999974E-6 : f32
    %180 = vector.broadcast %cst_65 : f32 to vector<16x1xf32>
    %181 = arith.addf %177, %180 : vector<16x1xf32>
    %182 = math.rsqrt %181 : vector<16x1xf32>
    %183 = vector.broadcast %182 : vector<16x1xf32> to vector<16x32xf32>
    %184 = arith.mulf %179, %183 : vector<16x32xf32>
    %185 = vector.broadcast %5 : vector<1x32xf32> to vector<16x32xf32>
    %186 = arith.mulf %184, %185 : vector<16x32xf32>
    %187 = vector.broadcast %6 : vector<1x32xf32> to vector<16x32xf32>
    %188 = arith.addf %186, %187 : vector<16x32xf32>
    %189 = arith.truncf %188 : vector<16x32xf32> to vector<16x32xbf16>
    %c0_66 = arith.constant 0 : index
    %c0_67 = arith.constant 0 : index
    %190 = vector.load %arg4[%c0_66, %c0_67] : memref<32x64xbf16, #tpu.memory_space<vmem>>, vector<32x64xbf16>
    %cst_68 = arith.constant dense<0.000000e+00> : vector<16x64xf32>
    %191 = tpu.matmul %189, %190, %cst_68 {dimension_numbers = #tpu.dot_dimension_numbers<[1], [0], [0], [1], [0, 0, 1, 1], [], []>} : vector<16x32xbf16>, vector<32x64xbf16>, vector<16x64xf32> -> vector<16x64xf32>
    %192 = vector.broadcast %7 : vector<1x64xf32> to vector<16x64xf32>
    %193 = arith.addf %191, %192 : vector<16x64xf32>
    %cst_69 = arith.constant 5.000000e-01 : f32
    %194 = vector.broadcast %cst_69 : f32 to vector<16x64xf32>
    %195 = arith.mulf %194, %193 : vector<16x64xf32>
    %cst_70 = arith.constant 0.707106769 : f32
    %196 = vector.broadcast %cst_70 : f32 to vector<16x64xf32>
    %197 = arith.mulf %193, %196 : vector<16x64xf32>
    %cst_71 = arith.constant 0.000000e+00 : f32
    %198 = vector.broadcast %cst_71 : f32 to vector<16x64xf32>
    %199 = arith.cmpf oge, %197, %198 : vector<16x64xf32>
    %cst_72 = arith.constant 1.000000e+00 : f32
    %cst_73 = arith.constant -1.000000e+00 : f32
    %200 = vector.broadcast %cst_72 : f32 to vector<16x64xf32>
    %201 = vector.broadcast %cst_73 : f32 to vector<16x64xf32>
    %202 = arith.select %199, %200, %201 : vector<16x64xi1>, vector<16x64xf32>
    %203 = math.absf %197 : vector<16x64xf32>
    %cst_74 = arith.constant 0.327591091 : f32
    %204 = vector.broadcast %cst_74 : f32 to vector<16x64xf32>
    %205 = arith.mulf %204, %203 : vector<16x64xf32>
    %cst_75 = arith.constant 1.000000e+00 : f32
    %206 = vector.broadcast %cst_75 : f32 to vector<16x64xf32>
    %207 = arith.addf %206, %205 : vector<16x64xf32>
    %208 = tpu.reciprocal %207 {approx = true} : vector<16x64xf32> -> vector<16x64xf32>
    %cst_76 = arith.constant 1.06140542 : f32
    %209 = vector.broadcast %cst_76 : f32 to vector<16x64xf32>
    %210 = arith.mulf %209, %208 : vector<16x64xf32>
    %cst_77 = arith.constant -1.45315206 : f32
    %211 = vector.broadcast %cst_77 : f32 to vector<16x64xf32>
    %212 = arith.addf %210, %211 : vector<16x64xf32>
    %213 = arith.mulf %212, %208 : vector<16x64xf32>
    %cst_78 = arith.constant 1.42141378 : f32
    %214 = vector.broadcast %cst_78 : f32 to vector<16x64xf32>
    %215 = arith.addf %213, %214 : vector<16x64xf32>
    %216 = arith.mulf %215, %208 : vector<16x64xf32>
    %cst_79 = arith.constant -0.284496725 : f32
    %217 = vector.broadcast %cst_79 : f32 to vector<16x64xf32>
    %218 = arith.addf %216, %217 : vector<16x64xf32>
    %219 = arith.mulf %218, %208 : vector<16x64xf32>
    %cst_80 = arith.constant 0.254829586 : f32
    %220 = vector.broadcast %cst_80 : f32 to vector<16x64xf32>
    %221 = arith.addf %219, %220 : vector<16x64xf32>
    %222 = arith.mulf %221, %208 : vector<16x64xf32>
    %cst_81 = arith.constant 0.000000e+00 : f32
    %223 = vector.broadcast %cst_81 : f32 to vector<16x64xf32>
    %224 = arith.subf %223, %203 : vector<16x64xf32>
    %225 = arith.mulf %224, %203 : vector<16x64xf32>
    %226 = math.exp %225 : vector<16x64xf32>
    %227 = arith.mulf %222, %226 : vector<16x64xf32>
    %cst_82 = arith.constant 1.000000e+00 : f32
    %228 = vector.broadcast %cst_82 : f32 to vector<16x64xf32>
    %229 = arith.subf %228, %227 : vector<16x64xf32>
    %230 = arith.mulf %202, %229 : vector<16x64xf32>
    %cst_83 = arith.constant 1.000000e+00 : f32
    %231 = vector.broadcast %cst_83 : f32 to vector<16x64xf32>
    %232 = arith.addf %231, %230 : vector<16x64xf32>
    %233 = arith.mulf %195, %232 : vector<16x64xf32>
    %234 = arith.truncf %233 : vector<16x64xf32> to vector<16x64xbf16>
    %c0_84 = arith.constant 0 : index
    %c0_85 = arith.constant 0 : index
    %235 = vector.load %arg5[%c0_84, %c0_85] : memref<64x32xbf16, #tpu.memory_space<vmem>>, vector<64x32xbf16>
    %cst_86 = arith.constant dense<0.000000e+00> : vector<16x32xf32>
    %236 = tpu.matmul %234, %235, %cst_86 {dimension_numbers = #tpu.dot_dimension_numbers<[1], [0], [0], [1], [0, 0, 1, 1], [], []>} : vector<16x64xbf16>, vector<64x32xbf16>, vector<16x32xf32> -> vector<16x32xf32>
    %237 = arith.addf %166, %236 : vector<16x32xf32>
    %238 = vector.broadcast %8 : vector<1x32xf32> to vector<16x32xf32>
    %239 = arith.addf %237, %238 : vector<16x32xf32>
    %c0_87 = arith.constant 0 : index
    %c0_88 = arith.constant 0 : index
    %240 = vector.load %arg6[%c0_87, %c0_88] : memref<16x32xf32, #tpu.memory_space<vmem>>, vector<16x32xf32>
    tpu.vector_store %arg6[%c0_87, %c0_88], %239 {strides = array<i32>} : memref<16x32xf32, #tpu.memory_space<vmem>>, vector<16x32xf32>,
    return
  }
}

</mosaic_0001>

<llo_original>
// kernel: transformer_encoder_layer.1
$region0: #{transformer_encoder_layer.1}
  #allocation0 [shape = 'u32[]', space=smem, size = 0x4, offset = 0x4, fixed_abs, tag = 'smem constant byte address 0x4 - core index']
  #allocation1 [shape = 'u32[144,128]{1,0:T(1,128)}', space=vmem, size = 0x12000, scoped, tag = 'internal scratch']
  %s0 = inlined_call_operand.vmem [shape: f32[16,32], index: 0, kind: input, shape index: {}]
  %s1 = inlined_call_operand.hbm [shape: f32[8,128], index: 1, kind: input, shape index: {}]
  %s2 = inlined_call_operand.vmem [shape: bf16[32,96], index: 2, kind: input, shape index: {}]
  %s3 = inlined_call_operand.vmem [shape: bf16[4,8,32], index: 3, kind: input, shape index: {}]
  %s4 = inlined_call_operand.hbm [shape: bf16[32,64], index: 4, kind: input, shape index: {}]
  %s5 = inlined_call_operand.vmem [shape: bf16[64,32], index: 5, kind: input, shape index: {}]
  %s6 = inlined_call_operand.hbm [shape: f32[16,32], index: 6, kind: output, shape index: {}]
  %s7 = sld [smem:[#allocation0]]
  $region42: #{transformer_encoder_layer.1} parent=0
    _
  %s9 = ssub.s32 1, %s7
  %s10 = scalar_select 0, %s9, %s7
  $region1: #{transformer_encoder_layer.1} parent=0
    #allocation2 [shape = 'u8[4096]{0}', space=vmem, size = 0x1000, scoped, tag = 'input window, operand 1, single buffered']
    #allocation3 [shape = 's32[1]{0}', space=sflag, size = 0x4, scoped, tag = 'scoped memory for transformer_encoder_layer.1']
    #allocation4 [shape = 's32[1]{0}', space=sflag, size = 0x4, scoped, tag = 'scoped memory for transformer_encoder_layer.1']
    #allocation5 [shape = 'u8[8192]{0}', space=vmem, size = 0x2000, scoped, tag = 'input window, operand 4, single buffered']
    #allocation6 [shape = 's32[1]{0}', space=sflag, size = 0x4, scoped, tag = 'scoped memory for transformer_encoder_layer.1']
    #allocation7 [shape = 'u8[8192]{0}', space=vmem, size = 0x2000, scoped, tag = 'output window, operand 0, single buffered']
    %11 = vsyncpa [#allocation3], 0
    %12 = vsyncpa [#allocation6], 0
    %13 = vsyncpa [#allocation4], 0
    // Predicated region
    $region2: #{transformer_encoder_layer.1} parent=1 // pred_check
      _
    $region3: #{transformer_encoder_layer.1} parent=1 // pred_check_branch
      %15 = sbr.rel (0) target = $region5
    $region4: #{transformer_encoder_layer.1} parent=1 // pred_region
      _
    $region5: #{transformer_encoder_layer.1} parent=1 // pred_fallthru
      _
    // Predicated region
    $region6: #{transformer_encoder_layer.1} parent=1 // pred_check
      _
    $region7: #{transformer_encoder_layer.1} parent=1 // pred_check_branch
      %17 = sbr.rel (0) target = $region9
    $region8: #{transformer_encoder_layer.1} parent=1 // pred_region
      %s19 = ssub.s32 128, 128
      %20 = vsyncadd [#allocation3], %s19
      %s22 = sshll.u32 [#allocation2], 4
      %s23 = int_to_ptr.vmem [resolvable:$true] %s22
      %25 = dma.hbm_to_vmem [thread:$0]  %s1, 128, %s23, [#allocation3]
    $region9: #{transformer_encoder_layer.1} parent=1 // pred_fallthru
      _
    // Predicated region
    $region10: #{transformer_encoder_layer.1} parent=1 // pred_check
      _
    $region11: #{transformer_encoder_layer.1} parent=1 // pred_check_branch
      %27 = sbr.rel (0) target = $region13
    $region12: #{transformer_encoder_layer.1} parent=1 // pred_region
      _
    $region13: #{transformer_encoder_layer.1} parent=1 // pred_fallthru
      _
    // Predicated region
    $region14: #{transformer_encoder_layer.1} parent=1 // pred_check
      _
    $region15: #{transformer_encoder_layer.1} parent=1 // pred_check_branch
      %29 = sbr.rel (0) target = $region17
    $region16: #{transformer_encoder_layer.1} parent=1 // pred_region
      _
    $region17: #{transformer_encoder_layer.1} parent=1 // pred_fallthru
      _
    // Predicated region
    $region18: #{transformer_encoder_layer.1} parent=1 // pred_check
      _
    $region19: #{transformer_encoder_layer.1} parent=1 // pred_check_branch
      %31 = sbr.rel (0) target = $region21
    $region20: #{transformer_encoder_layer.1} parent=1 // pred_region
      %s33 = ssub.s32 256, 256
      %34 = vsyncadd [#allocation6], %s33
      %s35 = sshll.u32 [#allocation5], 4
      %s36 = int_to_ptr.vmem [resolvable:$true] %s35
      %41 = dma.hbm_to_vmem [thread:$0]  %s4, 256, %s36, [#allocation6], 64, 64, 4
    $region21: #{transformer_encoder_layer.1} parent=1 // pred_fallthru
      _
    // Predicated region
    $region22: #{transformer_encoder_layer.1} parent=1 // pred_check
      _
    $region23: #{transformer_encoder_layer.1} parent=1 // pred_check_branch
      %43 = sbr.rel (0) target = $region25
    $region24: #{transformer_encoder_layer.1} parent=1 // pred_region
      _
    $region25: #{transformer_encoder_layer.1} parent=1 // pred_fallthru
      _
    // Predicated region
    $region26: #{transformer_encoder_layer.1} parent=1 // pred_check
      _
    $region27: #{transformer_encoder_layer.1} parent=1 // pred_check_branch
      %45 = sbr.rel (0) target = $region29
    $region28: #{transformer_encoder_layer.1} parent=1 // pred_region
      %46 = dma.done [#allocation3], 128
    $region29: #{transformer_encoder_layer.1} parent=1 // pred_fallthru
      _
    // Predicated region
    $region30: #{transformer_encoder_layer.1} parent=1 // pred_check
      _
    $region31: #{transformer_encoder_layer.1} parent=1 // pred_check_branch
      %48 = sbr.rel (0) target = $region33
    $region32: #{transformer_encoder_layer.1} parent=1 // pred_region
      %49 = dma.done [#allocation6], 256
    $region33: #{transformer_encoder_layer.1} parent=1 // pred_fallthru
      _
    %v51 = vld [vmem:[%s0] sm:$0xff]
    %v52 = vld [vmem:[%s0 + $0x8] sm:$0xff]
    %v53 = vld [vmem:[#allocation2] sm:$0x1]
    %v54 = vld [vmem:[#allocation2 + $0x1] sm:$0x1]
    %v55 = vld [vmem:[#allocation2 + $0x2] sm:$0x1]
    %v56 = vld [vmem:[#allocation2 + $0x3] sm:$0x1]
    %v57 = vld [vmem:[#allocation2 + $0x4] sm:$0x1]
    %v58 = vld [vmem:[#allocation2 + $0x5] sm:$0x1]
    %v59 = vld [vmem:[#allocation2 + $0x6] sm:$0x1]
    %v60 = vld [vmem:[#allocation2 + $0x7] sm:$0x1]
    %v61 = vlaneseq
    %v62 = vshrl.u32 %v61, 7
    %v63 = vadd.s32 %v62, 8
    %vm64 = vcmp.lt.s32.totalorder %v62, 0
    %v65 = vsub.s32 0, %v62
    %v66 = vsel %vm64, %v65, %v62
    %v67 = vshrl.u32 %v66, 1
    %v68 = vand.u32 %v66, 1
    %v69 = vsub.s32 0, %v68
    %v70 = vsel %vm64, %v69, %v68
    %vm71 = vcmp.lt.s32.totalorder %v63, 0
    %v72 = vsub.s32 0, %v63
    %v73 = vsel %vm71, %v72, %v63
    %v74 = vshrl.u32 %v73, 1
    %v75 = vand.u32 %v73, 1
    %v76 = vsub.s32 0, %v75
    %v77 = vsel %vm71, %v76, %v75
    %vm78 = vcmp.ne.s32.totalorder %v70, 0
    %vm79 = vcmp.ne.s32.totalorder %v77, 0
    %vm80 = vcmp.lt.s32.totalorder %v70, 0
    %vm81 = vcmp.lt.s32.totalorder %v77, 0
    %vm82 = vmand %vm80, %vm78
    %vm83 = vmand %vm81, %vm79
    %v84 = vadd.s32 %v70, 2
    %v85 = vadd.s32 %v77, 2
    %v86 = vsel %vm82, %v84, %v70
    %v87 = vsel %vm83, %v85, %v77
    %v88 = vlaneseq
    %v89 = vand.u32 %v88, 127
    %vm90 = vcmp.lt.s32.totalorder %v89, 0
    %v91 = vsub.s32 0, %v89
    %v92 = vsel %vm90, %v91, %v89
    %v93 = vshrl.u32 %v92, 1
    %v94 = vand.u32 %v92, 1
    %v95 = vsub.s32 0, %v94
    %v96 = vsel %vm90, %v95, %v94
    %vm97 = vcmp.ne.s32.totalorder %v96, 0
    %vm98 = vcmp.lt.s32.totalorder %v96, 0
    %vm99 = vmand %vm98, %vm97
    %v100 = vadd.s32 %v96, 2
    %v101 = vsel %vm99, %v100, %v96
    %vm102 = vcmp.eq.s32.totalorder %v86, %v101
    %vm103 = vcmp.eq.s32.totalorder %v87, %v101
    %v104 = vsel %vm102, 0.0, -1e+30
    %v105 = vsel %vm103, 0.0, -1e+30
    %vm106 = vcmask 261120
    %v107 = vsel %vm106, %v51, 0.0
    %108 = vadd.xlane.f32.xlu0 %v107
    %v109 = vpop.xlane.xlu0 %108
    %v110 = vsel %vm106, %v52, 0.0
    %111 = vadd.xlane.f32.xlu0 %v110
    %v112 = vpop.xlane.xlu0 %111
    %v113 = vrcp.pop 32.0
    %v114 = vmul.f32 %v109, %v113
    %v115 = vmul.f32 %v112, %v113
    %v116 = vsub.f32 %v51, %v114
    %v117 = vsub.f32 %v52, %v115
    %v118 = vmul.f32 %v116, %v116
    %v119 = vmul.f32 %v117, %v117
    %v120 = vsel %vm106, %v118, 0.0
    %121 = vadd.xlane.f32.xlu0 %v120
    %v122 = vpop.xlane.xlu0 %121
    %v123 = vsel %vm106, %v119, 0.0
    %124 = vadd.xlane.f32.xlu0 %v123
    %v125 = vpop.xlane.xlu0 %124
    %v126 = vmul.f32 %v122, %v113
    %v127 = vmul.f32 %v125, %v113
    %v128 = vadd.f32 %v126, 1e-05
    %v129 = vadd.f32 %v127, 1e-05
    %v130 = vrsqrt.pop %v128
    %v131 = vrsqrt.pop %v129
    %v132 = vmul.f32 %v116, %v130
    %v133 = vmul.f32 %v117, %v131
    %v134 = vlaneseq
    %v135 = vshrl.u32 %v134, 7
    %v136 = vsub.s32 0, %v135
    %v137 = vrot.slane %v53, %v136
    %v138 = vmul.f32 %v132, %v137
    %v139 = vmul.f32 %v133, %v137
    %v140 = vlaneseq
    %v141 = vshrl.u32 %v140, 7
    %v142 = vsub.s32 0, %v141
    %v143 = vrot.slane %v54, %v142
    %v144 = vadd.f32 %v138, %v143
    %v145 = vadd.f32 %v139, %v143
    %v146 = vpack.c.bf16 %v145, %v144
    %v147 = vld [vmem:[%s2] sm:$0xf]
    %v148 = vld [vmem:[%s2 + $0x4] sm:$0xf]
    %v149 = vld [vmem:[%s2 + $0x8] sm:$0xf]
    %v150 = vld [vmem:[%s2 + $0xc] sm:$0xf]
    %v151 = vlaneseq
    %v152 = vshrl.u32 %v151, 7
    %v153 = vsub.s32 0, %v152
    %v154 = vrot.slane %v55, %v153
    %v159 = vunpack.c.l.b16 %v147
    %v160 = vunpack.c.l.b16 %v148
    %v161 = vunpack.c.l.b16 %v149
    %v162 = vunpack.c.l.b16 %v150
    %v163 = vpack.c.b16 %v160, %v159
    %v164 = vpack.c.b16 %v162, %v161
    %v168 = vsel %vm106, %v146, 0
    %170 = vmatprep.subr.bf16.mxu0 0
    %171 = vmatpush1.bf16.msra.mxu0 %v163
    %172 = vmatprep.subr.bf16.mxu0 0
    %173 = vmatpush1.bf16.msra.mxu0 %v164
    %174 = vmatprep.subr.bf16.mxu0 0
    %175 = vmatpush1.bf16.msra.mxu0 0
    %176 = vmatprep.subr.bf16.mxu0 0
    %177 = vmatpush1.bf16.msra.mxu0 0
    %178 = vmatprep.subr.bf16.mxu0 0
    %179 = vmatpush1.bf16.msra.mxu0 0
    %180 = vmatprep.subr.bf16.mxu0 0
    %181 = vmatpush1.bf16.msra.mxu0 0
    %182 = vmatprep.subr.bf16.mxu0 0
    %183 = vmatpush1.bf16.msra.mxu0 0
    %184 = vmatprep.subr.bf16.mxu0 0
    %185 = vmatpush1.bf16.msra.mxu0 0
    %186 = vmatprep.subr.bf16.mxu0 0
    %187 = vmatpush1.bf16.msra.mxu0 0
    %188 = vmatprep.subr.bf16.mxu0 0
    %189 = vmatpush1.bf16.msra.mxu0 0
    %190 = vmatprep.subr.bf16.mxu0 0
    %191 = vmatpush1.bf16.msra.mxu0 0
    %192 = vmatprep.subr.bf16.mxu0 0
    %193 = vmatpush1.bf16.msra.mxu0 0
    %194 = vmatprep.subr.bf16.mxu0 0
    %195 = vmatpush1.bf16.msra.mxu0 0
    %196 = vmatprep.subr.bf16.mxu0 0
    %197 = vmatpush1.bf16.msra.mxu0 0
    %198 = vmatprep.subr.bf16.mxu0 0
    %199 = vmatpush1.bf16.msra.mxu0 0
    %200 = vmatprep.subr.bf16.mxu0 0
    %201 = vmatpush1.bf16.msra.mxu0 0
    %202 = vmatprep.mubr.bf16.mxu0 0
    %203 = vmatmul.mubr.bf16.gmra.mrb[0].mxu0 %v168
    %v204 = vpop.f32.mrb[0].mxu0
    %v205 = vadd.f32 %v154, %v204
    %v206 = vpop.f32.mrb[0].mxu0
    %v207 = vpop.f32.mrb[0].mxu0
    %v208 = vadd.f32 %v154, %v207
    %v209 = vpop.f32.mrb[0].mxu0
    %210 = vdwg.mxu0
    %v211 = vpack.c.bf16 %v208, %v205
    %213 = vrot.lane.b32.xlu0 %v211, 96
    %v214 = vpop.permute.xlu0 %213
    %vm215 = vcmask 64512
    %v217 = vsel %vm215, %v211, 0
    %v220 = vsel %vm215, %v214, 0
    %222 = vmatprep.subr.bf16.mxu0 0
    %223 = vmatpush1.bf16.xpose.msra.mxu0 %v220
    %224 = vmatprep.subr.bf16.mxu0 0
    %225 = vmatpush1.bf16.xpose.msra.mxu0 0
    %226 = vmatprep.subr.bf16.mxu0 0
    %227 = vmatpush1.bf16.xpose.msra.mxu0 0
    %228 = vmatprep.subr.bf16.mxu0 0
    %229 = vmatpush1.bf16.xpose.msra.mxu0 0
    %230 = vmatprep.subr.bf16.mxu0 0
    %231 = vmatpush1.bf16.xpose.msra.mxu0 0
    %232 = vmatprep.subr.bf16.mxu0 0
    %233 = vmatpush1.bf16.xpose.msra.mxu0 0
    %234 = vmatprep.subr.bf16.mxu0 0
    %235 = vmatpush1.bf16.xpose.msra.mxu0 0
    %236 = vmatprep.subr.bf16.mxu0 0
    %237 = vmatpush1.bf16.xpose.msra.mxu0 0
    %238 = vmatprep.subr.bf16.mxu0 0
    %239 = vmatpush1.bf16.xpose.msra.mxu0 0
    %240 = vmatprep.subr.bf16.mxu0 0
    %241 = vmatpush1.bf16.xpose.msra.mxu0 0
    %242 = vmatprep.subr.bf16.mxu0 0
    %243 = vmatpush1.bf16.xpose.msra.mxu0 0
    %244 = vmatprep.subr.bf16.mxu0 0
    %245 = vmatpush1.bf16.xpose.msra.mxu0 0
    %246 = vmatprep.subr.bf16.mxu0 0
    %247 = vmatpush1.bf16.xpose.msra.mxu0 0
    %248 = vmatprep.subr.bf16.mxu0 0
    %249 = vmatpush1.bf16.xpose.msra.mxu0 0
    %250 = vmatprep.subr.bf16.mxu0 0
    %251 = vmatpush1.bf16.xpose.msra.mxu0 0
    %252 = vmatprep.subr.bf16.mxu0 0
    %253 = vmatpush1.bf16.xpose.msra.mxu0 0
    %254 = vmatprep.mubr.bf16.mxu0 0
    %255 = vmatmul.mubr.bf16.gmra.mrb[0].mxu0 %v217
    %v256 = vpop.f32.mrb[0].mxu0
    %v257 = vadd.f32 %v104, %v256
    %v258 = vpop.f32.mrb[0].mxu0
    %v259 = vpop.f32.mrb[0].mxu0
    %v260 = vadd.f32 %v105, %v259
    %v261 = vpop.f32.mrb[0].mxu0
    %262 = vdwg.mxu0
    %vm263 = vcmask 130048
    %v264 = vsel %vm263, %v257, -inf
    %265 = vmax.xlane.f32.xlu0 %v264
    %v266 = vpop.xlane.xlu0 %265
    %v267 = vsel %vm263, %v260, -inf
    %268 = vmax.xlane.f32.xlu0 %v267
    %v269 = vpop.xlane.xlu0 %268
    %v270 = vsub.f32 %v257, %v266
    %v271 = vsub.f32 %v260, %v269
    %v272 = vmul.f32 %v270, 1.442695
    %v273 = vpow.pop %v272
    %v274 = vmul.f32 %v271, 1.442695
    %v275 = vpow.pop %v274
    %v276 = vsel %vm263, %v273, 0.0
    %277 = vadd.xlane.f32.xlu0 %v276
    %v278 = vpop.xlane.xlu0 %277
    %v279 = vsel %vm263, %v275, 0.0
    %280 = vadd.xlane.f32.xlu0 %v279
    %v281 = vpop.xlane.xlu0 %280
    %v282 = vrcp.pop %v278
    %v283 = vrcp.pop %v281
    %v284 = vmul.f32 %v273, %v282
    %v285 = vmul.f32 %v275, %v283
    %v286 = vpack.c.bf16 %v285, %v284
    %287 = vrot.lane.b32.xlu0 %v211, 64
    %v288 = vpop.permute.xlu0 %287
    %v291 = vsel %vm263, %v286, 0
    %293 = vmatprep.subr.bf16.mxu0 0
    %294 = vmatpush1.bf16.msra.mxu0 %v288
    %295 = vmatprep.subr.bf16.mxu0 0
    %296 = vmatpush1.bf16.msra.mxu0 0
    %297 = vmatprep.subr.bf16.mxu0 0
    %298 = vmatpush1.bf16.msra.mxu0 0
    %299 = vmatprep.subr.bf16.mxu0 0
    %300 = vmatpush1.bf16.msra.mxu0 0
    %301 = vmatprep.subr.bf16.mxu0 0
    %302 = vmatpush1.bf16.msra.mxu0 0
    %303 = vmatprep.subr.bf16.mxu0 0
    %304 = vmatpush1.bf16.msra.mxu0 0
    %305 = vmatprep.subr.bf16.mxu0 0
    %306 = vmatpush1.bf16.msra.mxu0 0
    %307 = vmatprep.subr.bf16.mxu0 0
    %308 = vmatpush1.bf16.msra.mxu0 0
    %309 = vmatprep.subr.bf16.mxu0 0
    %310 = vmatpush1.bf16.msra.mxu0 0
    %311 = vmatprep.subr.bf16.mxu0 0
    %312 = vmatpush1.bf16.msra.mxu0 0
    %313 = vmatprep.subr.bf16.mxu0 0
    %314 = vmatpush1.bf16.msra.mxu0 0
    %315 = vmatprep.subr.bf16.mxu0 0
    %316 = vmatpush1.bf16.msra.mxu0 0
    %317 = vmatprep.subr.bf16.mxu0 0
    %318 = vmatpush1.bf16.msra.mxu0 0
    %319 = vmatprep.subr.bf16.mxu0 0
    %320 = vmatpush1.bf16.msra.mxu0 0
    %321 = vmatprep.subr.bf16.mxu0 0
    %322 = vmatpush1.bf16.msra.mxu0 0
    %323 = vmatprep.subr.bf16.mxu0 0
    %324 = vmatpush1.bf16.msra.mxu0 0
    %325 = vmatprep.mubr.bf16.mxu0 0
    %326 = vmatmul.mubr.bf16.gmra.mrb[0].mxu0 %v291
    %v327 = vpop.f32.mrb[0].mxu0
    %v328 = vadd.f32 0.0, %v327
    %v329 = vpop.f32.mrb[0].mxu0
    %v330 = vpop.f32.mrb[0].mxu0
    %v331 = vadd.f32 0.0, %v330
    %v332 = vpop.f32.mrb[0].mxu0
    %333 = vdwg.mxu0
    %v334 = vpack.c.bf16 %v331, %v328
    %v335 = vld [vmem:[%s3] sm:$0xf]
    %336 = vrot.lane.b32.xlu0 %v211, 120
    %v337 = vpop.permute.xlu0 %336
    %338 = vrot.lane.b32.xlu0 %v211, 88
    %v339 = vpop.permute.xlu0 %338
    %v341 = vsel %vm215, %v337, 0
    %v344 = vsel %vm215, %v339, 0
    %346 = vmatprep.subr.bf16.mxu0 0
    %347 = vmatpush1.bf16.xpose.msra.mxu0 %v344
    %348 = vmatprep.subr.bf16.mxu0 0
    %349 = vmatpush1.bf16.xpose.msra.mxu0 0
    %350 = vmatprep.subr.bf16.mxu0 0
    %351 = vmatpush1.bf16.xpose.msra.mxu0 0
    %352 = vmatprep.subr.bf16.mxu0 0
    %353 = vmatpush1.bf16.xpose.msra.mxu0 0
    %354 = vmatprep.subr.bf16.mxu0 0
    %355 = vmatpush1.bf16.xpose.msra.mxu0 0
    %356 = vmatprep.subr.bf16.mxu0 0
    %357 = vmatpush1.bf16.xpose.msra.mxu0 0
    %358 = vmatprep.subr.bf16.mxu0 0
    %359 = vmatpush1.bf16.xpose.msra.mxu0 0
    %360 = vmatprep.subr.bf16.mxu0 0
    %361 = vmatpush1.bf16.xpose.msra.mxu0 0
    %362 = vmatprep.subr.bf16.mxu0 0
    %363 = vmatpush1.bf16.xpose.msra.mxu0 0
    %364 = vmatprep.subr.bf16.mxu0 0
    %365 = vmatpush1.bf16.xpose.msra.mxu0 0
    %366 = vmatprep.subr.bf16.mxu0 0
    %367 = vmatpush1.bf16.xpose.msra.mxu0 0
    %368 = vmatprep.subr.bf16.mxu0 0
    %369 = vmatpush1.bf16.xpose.msra.mxu0 0
    %370 = vmatprep.subr.bf16.mxu0 0
    %371 = vmatpush1.bf16.xpose.msra.mxu0 0
    %372 = vmatprep.subr.bf16.mxu0 0
    %373 = vmatpush1.bf16.xpose.msra.mxu0 0
    %374 = vmatprep.subr.bf16.mxu0 0
    %375 = vmatpush1.bf16.xpose.msra.mxu0 0
    %376 = vmatprep.subr.bf16.mxu0 0
    %377 = vmatpush1.bf16.xpose.msra.mxu0 0
    %378 = vmatprep.mubr.bf16.mxu0 0
    %379 = vmatmul.mubr.bf16.gmra.mrb[0].mxu0 %v341
    %v380 = vpop.f32.mrb[0].mxu0
    %v381 = vadd.f32 %v104, %v380
    %v382 = vpop.f32.mrb[0].mxu0
    %v383 = vpop.f32.mrb[0].mxu0
    %v384 = vadd.f32 %v105, %v383
    %v385 = vpop.f32.mrb[0].mxu0
    %386 = vdwg.mxu0
    %v387 = vsel %vm263, %v381, -inf
    %388 = vmax.xlane.f32.xlu0 %v387
    %v389 = vpop.xlane.xlu0 %388
    %v390 = vsel %vm263, %v384, -inf
    %391 = vmax.xlane.f32.xlu0 %v390
    %v392 = vpop.xlane.xlu0 %391
    %v393 = vsub.f32 %v381, %v389
    %v394 = vsub.f32 %v384, %v392
    %v395 = vmul.f32 %v393, 1.442695
    %v396 = vpow.pop %v395
    %v397 = vmul.f32 %v394, 1.442695
    %v398 = vpow.pop %v397
    %v399 = vsel %vm263, %v396, 0.0
    %400 = vadd.xlane.f32.xlu0 %v399
    %v401 = vpop.xlane.xlu0 %400
    %v402 = vsel %vm263, %v398, 0.0
    %403 = vadd.xlane.f32.xlu0 %v402
    %v404 = vpop.xlane.xlu0 %403
    %v405 = vrcp.pop %v401
    %v406 = vrcp.pop %v404
    %v407 = vmul.f32 %v396, %v405
    %v408 = vmul.f32 %v398, %v406
    %v409 = vpack.c.bf16 %v408, %v407
    %410 = vrot.lane.b32.xlu0 %v211, 56
    %v411 = vpop.permute.xlu0 %410
    %v414 = vsel %vm263, %v409, 0
    %416 = vmatprep.subr.bf16.mxu0 0
    %417 = vmatpush1.bf16.msra.mxu0 %v411
    %418 = vmatprep.subr.bf16.mxu0 0
    %419 = vmatpush1.bf16.msra.mxu0 0
    %420 = vmatprep.subr.bf16.mxu0 0
    %421 = vmatpush1.bf16.msra.mxu0 0
    %422 = vmatprep.subr.bf16.mxu0 0
    %423 = vmatpush1.bf16.msra.mxu0 0
    %424 = vmatprep.subr.bf16.mxu0 0
    %425 = vmatpush1.bf16.msra.mxu0 0
    %426 = vmatprep.subr.bf16.mxu0 0
    %427 = vmatpush1.bf16.msra.mxu0 0
    %428 = vmatprep.subr.bf16.mxu0 0
    %429 = vmatpush1.bf16.msra.mxu0 0
    %430 = vmatprep.subr.bf16.mxu0 0
    %431 = vmatpush1.bf16.msra.mxu0 0
    %432 = vmatprep.subr.bf16.mxu0 0
    %433 = vmatpush1.bf16.msra.mxu0 0
    %434 = vmatprep.subr.bf16.mxu0 0
    %435 = vmatpush1.bf16.msra.mxu0 0
    %436 = vmatprep.subr.bf16.mxu0 0
    %437 = vmatpush1.bf16.msra.mxu0 0
    %438 = vmatprep.subr.bf16.mxu0 0
    %439 = vmatpush1.bf16.msra.mxu0 0
    %440 = vmatprep.subr.bf16.mxu0 0
    %441 = vmatpush1.bf16.msra.mxu0 0
    %442 = vmatprep.subr.bf16.mxu0 0
    %443 = vmatpush1.bf16.msra.mxu0 0
    %444 = vmatprep.subr.bf16.mxu0 0
    %445 = vmatpush1.bf16.msra.mxu0 0
    %446 = vmatprep.subr.bf16.mxu0 0
    %447 = vmatpush1.bf16.msra.mxu0 0
    %448 = vmatprep.mubr.bf16.mxu0 0
    %449 = vmatmul.mubr.bf16.gmra.mrb[0].mxu0 %v414
    %v450 = vpop.f32.mrb[0].mxu0
    %v451 = vadd.f32 0.0, %v450
    %v452 = vpop.f32.mrb[0].mxu0
    %v453 = vpop.f32.mrb[0].mxu0
    %v454 = vadd.f32 0.0, %v453
    %v455 = vpop.f32.mrb[0].mxu0
    %456 = vdwg.mxu0
    %v457 = vpack.c.bf16 %v454, %v451
    %s458 = scalar_lea.vmem %s3, 4
    %v459 = vld [vmem:[%s458] sm:$0xf]
    %v461 = vsel %vm215, %v457, 0
    %vm463 = vcmask 1043456
    %v465 = vsel %vm463, %v459, 0
    %467 = vmatprep.subr.bf16.mxu0 0
    %468 = vmatpush1.bf16.msra.mxu0 %v465
    %469 = vmatprep.subr.bf16.mxu0 0
    %470 = vmatpush1.bf16.msra.mxu0 0
    %471 = vmatprep.subr.bf16.mxu0 0
    %472 = vmatpush1.bf16.msra.mxu0 0
    %473 = vmatprep.subr.bf16.mxu0 0
    %474 = vmatpush1.bf16.msra.mxu0 0
    %475 = vmatprep.subr.bf16.mxu0 0
    %476 = vmatpush1.bf16.msra.mxu0 0
    %477 = vmatprep.subr.bf16.mxu0 0
    %478 = vmatpush1.bf16.msra.mxu0 0
    %479 = vmatprep.subr.bf16.mxu0 0
    %480 = vmatpush1.bf16.msra.mxu0 0
    %481 = vmatprep.subr.bf16.mxu0 0
    %482 = vmatpush1.bf16.msra.mxu0 0
    %483 = vmatprep.subr.bf16.mxu0 0
    %484 = vmatpush1.bf16.msra.mxu0 0
    %485 = vmatprep.subr.bf16.mxu0 0
    %486 = vmatpush1.bf16.msra.mxu0 0
    %487 = vmatprep.subr.bf16.mxu0 0
    %488 = vmatpush1.bf16.msra.mxu0 0
    %489 = vmatprep.subr.bf16.mxu0 0
    %490 = vmatpush1.bf16.msra.mxu0 0
    %491 = vmatprep.subr.bf16.mxu0 0
    %492 = vmatpush1.bf16.msra.mxu0 0
    %493 = vmatprep.subr.bf16.mxu0 0
    %494 = vmatpush1.bf16.msra.mxu0 0
    %495 = vmatprep.subr.bf16.mxu0 0
    %496 = vmatpush1.bf16.msra.mxu0 0
    %497 = vmatprep.subr.bf16.mxu0 0
    %498 = vmatpush1.bf16.msra.mxu0 0
    %499 = vmatprep.mubr.bf16.mxu0 0
    %500 = vmatmul.mubr.bf16.gmra.mrb[0].mxu0 %v461
    %v501 = vpop.f32.mrb[0].mxu0
    %v502 = vadd.f32 0.0, %v501
    %v503 = vpop.f32.mrb[0].mxu0
    %v504 = vpop.f32.mrb[0].mxu0
    %v505 = vadd.f32 0.0, %v504
    %v506 = vpop.f32.mrb[0].mxu0
    %507 = vdwg.mxu0
    %v509 = vsel %vm215, %v334, 0
    %v512 = vsel %vm463, %v335, 0
    %514 = vmatprep.subr.bf16.mxu0 0
    %515 = vmatpush1.bf16.msra.mxu0 %v512
    %516 = vmatprep.subr.bf16.mxu0 0
    %517 = vmatpush1.bf16.msra.mxu0 0
    %518 = vmatprep.subr.bf16.mxu0 0
    %519 = vmatpush1.bf16.msra.mxu0 0
    %520 = vmatprep.subr.bf16.mxu0 0
    %521 = vmatpush1.bf16.msra.mxu0 0
    %522 = vmatprep.subr.bf16.mxu0 0
    %523 = vmatpush1.bf16.msra.mxu0 0
    %524 = vmatprep.subr.bf16.mxu0 0
    %525 = vmatpush1.bf16.msra.mxu0 0
    %526 = vmatprep.subr.bf16.mxu0 0
    %527 = vmatpush1.bf16.msra.mxu0 0
    %528 = vmatprep.subr.bf16.mxu0 0
    %529 = vmatpush1.bf16.msra.mxu0 0
    %530 = vmatprep.subr.bf16.mxu0 0
    %531 = vmatpush1.bf16.msra.mxu0 0
    %532 = vmatprep.subr.bf16.mxu0 0
    %533 = vmatpush1.bf16.msra.mxu0 0
    %534 = vmatprep.subr.bf16.mxu0 0
    %535 = vmatpush1.bf16.msra.mxu0 0
    %536 = vmatprep.subr.bf16.mxu0 0
    %537 = vmatpush1.bf16.msra.mxu0 0
    %538 = vmatprep.subr.bf16.mxu0 0
    %539 = vmatpush1.bf16.msra.mxu0 0
    %540 = vmatprep.subr.bf16.mxu0 0
    %541 = vmatpush1.bf16.msra.mxu0 0
    %542 = vmatprep.subr.bf16.mxu0 0
    %543 = vmatpush1.bf16.msra.mxu0 0
    %544 = vmatprep.subr.bf16.mxu0 0
    %545 = vmatpush1.bf16.msra.mxu0 0
    %546 = vmatprep.mubr.bf16.mxu0 0
    %547 = vmatmul.mubr.bf16.gmra.mrb[0].mxu0 %v509
    %v548 = vpop.f32.mrb[0].mxu0
    %v549 = vadd.f32 %v502, %v548
    %v550 = vpop.f32.mrb[0].mxu0
    %v551 = vpop.f32.mrb[0].mxu0
    %v552 = vadd.f32 %v505, %v551
    %v553 = vpop.f32.mrb[0].mxu0
    %554 = vdwg.mxu0
    %555 = vrot.lane.b32.xlu0 %v211, 112
    %v556 = vpop.permute.xlu0 %555
    %557 = vrot.lane.b32.xlu0 %v211, 80
    %v558 = vpop.permute.xlu0 %557
    %v560 = vsel %vm215, %v556, 0
    %v563 = vsel %vm215, %v558, 0
    %565 = vmatprep.subr.bf16.mxu0 0
    %566 = vmatpush1.bf16.xpose.msra.mxu0 %v563
    %567 = vmatprep.subr.bf16.mxu0 0
    %568 = vmatpush1.bf16.xpose.msra.mxu0 0
    %569 = vmatprep.subr.bf16.mxu0 0
    %570 = vmatpush1.bf16.xpose.msra.mxu0 0
    %571 = vmatprep.subr.bf16.mxu0 0
    %572 = vmatpush1.bf16.xpose.msra.mxu0 0
    %573 = vmatprep.subr.bf16.mxu0 0
    %574 = vmatpush1.bf16.xpose.msra.mxu0 0
    %575 = vmatprep.subr.bf16.mxu0 0
    %576 = vmatpush1.bf16.xpose.msra.mxu0 0
    %577 = vmatprep.subr.bf16.mxu0 0
    %578 = vmatpush1.bf16.xpose.msra.mxu0 0
    %579 = vmatprep.subr.bf16.mxu0 0
    %580 = vmatpush1.bf16.xpose.msra.mxu0 0
    %581 = vmatprep.subr.bf16.mxu0 0
    %582 = vmatpush1.bf16.xpose.msra.mxu0 0
    %583 = vmatprep.subr.bf16.mxu0 0
    %584 = vmatpush1.bf16.xpose.msra.mxu0 0
    %585 = vmatprep.subr.bf16.mxu0 0
    %586 = vmatpush1.bf16.xpose.msra.mxu0 0
    %587 = vmatprep.subr.bf16.mxu0 0
    %588 = vmatpush1.bf16.xpose.msra.mxu0 0
    %589 = vmatprep.subr.bf16.mxu0 0
    %590 = vmatpush1.bf16.xpose.msra.mxu0 0
    %591 = vmatprep.subr.bf16.mxu0 0
    %592 = vmatpush1.bf16.xpose.msra.mxu0 0
    %593 = vmatprep.subr.bf16.mxu0 0
    %594 = vmatpush1.bf16.xpose.msra.mxu0 0
    %595 = vmatprep.subr.bf16.mxu0 0
    %596 = vmatpush1.bf16.xpose.msra.mxu0 0
    %597 = vmatprep.mubr.bf16.mxu0 0
    %598 = vmatmul.mubr.bf16.gmra.mrb[0].mxu0 %v560
    %v599 = vpop.f32.mrb[0].mxu0
    %v600 = vadd.f32 %v104, %v599
    %v601 = vpop.f32.mrb[0].mxu0
    %v602 = vpop.f32.mrb[0].mxu0
    %v603 = vadd.f32 %v105, %v602
    %v604 = vpop.f32.mrb[0].mxu0
    %605 = vdwg.mxu0
    %v606 = vsel %vm263, %v600, -inf
    %607 = vmax.xlane.f32.xlu0 %v606
    %v608 = vpop.xlane.xlu0 %607
    %v609 = vsel %vm263, %v603, -inf
    %610 = vmax.xlane.f32.xlu0 %v609
    %v611 = vpop.xlane.xlu0 %610
    %v612 = vsub.f32 %v600, %v608
    %v613 = vsub.f32 %v603, %v611
    %v614 = vmul.f32 %v612, 1.442695
    %v615 = vpow.pop %v614
    %v616 = vmul.f32 %v613, 1.442695
    %v617 = vpow.pop %v616
    %v618 = vsel %vm263, %v615, 0.0
    %619 = vadd.xlane.f32.xlu0 %v618
    %v620 = vpop.xlane.xlu0 %619
    %v621 = vsel %vm263, %v617, 0.0
    %622 = vadd.xlane.f32.xlu0 %v621
    %v623 = vpop.xlane.xlu0 %622
    %v624 = vrcp.pop %v620
    %v625 = vrcp.pop %v623
    %v626 = vmul.f32 %v615, %v624
    %v627 = vmul.f32 %v617, %v625
    %v628 = vpack.c.bf16 %v627, %v626
    %629 = vrot.lane.b32.xlu0 %v211, 48
    %v630 = vpop.permute.xlu0 %629
    %v633 = vsel %vm263, %v628, 0
    %635 = vmatprep.subr.bf16.mxu0 0
    %636 = vmatpush1.bf16.msra.mxu0 %v630
    %637 = vmatprep.subr.bf16.mxu0 0
    %638 = vmatpush1.bf16.msra.mxu0 0
    %639 = vmatprep.subr.bf16.mxu0 0
    %640 = vmatpush1.bf16.msra.mxu0 0
    %641 = vmatprep.subr.bf16.mxu0 0
    %642 = vmatpush1.bf16.msra.mxu0 0
    %643 = vmatprep.subr.bf16.mxu0 0
    %644 = vmatpush1.bf16.msra.mxu0 0
    %645 = vmatprep.subr.bf16.mxu0 0
    %646 = vmatpush1.bf16.msra.mxu0 0
    %647 = vmatprep.subr.bf16.mxu0 0
    %648 = vmatpush1.bf16.msra.mxu0 0
    %649 = vmatprep.subr.bf16.mxu0 0
    %650 = vmatpush1.bf16.msra.mxu0 0
    %651 = vmatprep.subr.bf16.mxu0 0
    %652 = vmatpush1.bf16.msra.mxu0 0
    %653 = vmatprep.subr.bf16.mxu0 0
    %654 = vmatpush1.bf16.msra.mxu0 0
    %655 = vmatprep.subr.bf16.mxu0 0
    %656 = vmatpush1.bf16.msra.mxu0 0
    %657 = vmatprep.subr.bf16.mxu0 0
    %658 = vmatpush1.bf16.msra.mxu0 0
    %659 = vmatprep.subr.bf16.mxu0 0
    %660 = vmatpush1.bf16.msra.mxu0 0
    %661 = vmatprep.subr.bf16.mxu0 0
    %662 = vmatpush1.bf16.msra.mxu0 0
    %663 = vmatprep.subr.bf16.mxu0 0
    %664 = vmatpush1.bf16.msra.mxu0 0
    %665 = vmatprep.subr.bf16.mxu0 0
    %666 = vmatpush1.bf16.msra.mxu0 0
    %667 = vmatprep.mubr.bf16.mxu0 0
    %668 = vmatmul.mubr.bf16.gmra.mrb[0].mxu0 %v633
    %v669 = vpop.f32.mrb[0].mxu0
    %v670 = vadd.f32 0.0, %v669
    %v671 = vpop.f32.mrb[0].mxu0
    %v672 = vpop.f32.mrb[0].mxu0
    %v673 = vadd.f32 0.0, %v672
    %v674 = vpop.f32.mrb[0].mxu0
    %675 = vdwg.mxu0
    %v676 = vpack.c.bf16 %v673, %v670
    %s677 = scalar_lea.vmem %s3, 8
    %v678 = vld [vmem:[%s677] sm:$0xf]
    %v680 = vsel %vm215, %v676, 0
    %v683 = vsel %vm463, %v678, 0
    %685 = vmatprep.subr.bf16.mxu0 0
    %686 = vmatpush1.bf16.msra.mxu0 %v683
    %687 = vmatprep.subr.bf16.mxu0 0
    %688 = vmatpush1.bf16.msra.mxu0 0
    %689 = vmatprep.subr.bf16.mxu0 0
    %690 = vmatpush1.bf16.msra.mxu0 0
    %691 = vmatprep.subr.bf16.mxu0 0
    %692 = vmatpush1.bf16.msra.mxu0 0
    %693 = vmatprep.subr.bf16.mxu0 0
    %694 = vmatpush1.bf16.msra.mxu0 0
    %695 = vmatprep.subr.bf16.mxu0 0
    %696 = vmatpush1.bf16.msra.mxu0 0
    %697 = vmatprep.subr.bf16.mxu0 0
    %698 = vmatpush1.bf16.msra.mxu0 0
    %699 = vmatprep.subr.bf16.mxu0 0
    %700 = vmatpush1.bf16.msra.mxu0 0
    %701 = vmatprep.subr.bf16.mxu0 0
    %702 = vmatpush1.bf16.msra.mxu0 0
    %703 = vmatprep.subr.bf16.mxu0 0
    %704 = vmatpush1.bf16.msra.mxu0 0
    %705 = vmatprep.subr.bf16.mxu0 0
    %706 = vmatpush1.bf16.msra.mxu0 0
    %707 = vmatprep.subr.bf16.mxu0 0
    %708 = vmatpush1.bf16.msra.mxu0 0
    %709 = vmatprep.subr.bf16.mxu0 0
    %710 = vmatpush1.bf16.msra.mxu0 0
    %711 = vmatprep.subr.bf16.mxu0 0
    %712 = vmatpush1.bf16.msra.mxu0 0
    %713 = vmatprep.subr.bf16.mxu0 0
    %714 = vmatpush1.bf16.msra.mxu0 0
    %715 = vmatprep.subr.bf16.mxu0 0
    %716 = vmatpush1.bf16.msra.mxu0 0
    %717 = vmatprep.mubr.bf16.mxu0 0
    %718 = vmatmul.mubr.bf16.gmra.mrb[0].mxu0 %v680
    %v719 = vpop.f32.mrb[0].mxu0
    %v720 = vadd.f32 0.0, %v719
    %v721 = vpop.f32.mrb[0].mxu0
    %v722 = vpop.f32.mrb[0].mxu0
    %v723 = vadd.f32 0.0, %v722
    %v724 = vpop.f32.mrb[0].mxu0
    %725 = vdwg.mxu0
    %v726 = vadd.f32 %v549, %v720
    %v727 = vadd.f32 %v552, %v723
    %728 = vrot.lane.b32.xlu0 %v211, 104
    %v729 = vpop.permute.xlu0 %728
    %730 = vrot.lane.b32.xlu0 %v211, 72
    %v731 = vpop.permute.xlu0 %730
    %v733 = vsel %vm215, %v729, 0
    %v736 = vsel %vm215, %v731, 0
    %738 = vmatprep.subr.bf16.mxu0 0
    %739 = vmatpush1.bf16.xpose.msra.mxu0 %v736
    %740 = vmatprep.subr.bf16.mxu0 0
    %741 = vmatpush1.bf16.xpose.msra.mxu0 0
    %742 = vmatprep.subr.bf16.mxu0 0
    %743 = vmatpush1.bf16.xpose.msra.mxu0 0
    %744 = vmatprep.subr.bf16.mxu0 0
    %745 = vmatpush1.bf16.xpose.msra.mxu0 0
    %746 = vmatprep.subr.bf16.mxu0 0
    %747 = vmatpush1.bf16.xpose.msra.mxu0 0
    %748 = vmatprep.subr.bf16.mxu0 0
    %749 = vmatpush1.bf16.xpose.msra.mxu0 0
    %750 = vmatprep.subr.bf16.mxu0 0
    %751 = vmatpush1.bf16.xpose.msra.mxu0 0
    %752 = vmatprep.subr.bf16.mxu0 0
    %753 = vmatpush1.bf16.xpose.msra.mxu0 0
    %754 = vmatprep.subr.bf16.mxu0 0
    %755 = vmatpush1.bf16.xpose.msra.mxu0 0
    %756 = vmatprep.subr.bf16.mxu0 0
    %757 = vmatpush1.bf16.xpose.msra.mxu0 0
    %758 = vmatprep.subr.bf16.mxu0 0
    %759 = vmatpush1.bf16.xpose.msra.mxu0 0
    %760 = vmatprep.subr.bf16.mxu0 0
    %761 = vmatpush1.bf16.xpose.msra.mxu0 0
    %762 = vmatprep.subr.bf16.mxu0 0
    %763 = vmatpush1.bf16.xpose.msra.mxu0 0
    %764 = vmatprep.subr.bf16.mxu0 0
    %765 = vmatpush1.bf16.xpose.msra.mxu0 0
    %766 = vmatprep.subr.bf16.mxu0 0
    %767 = vmatpush1.bf16.xpose.msra.mxu0 0
    %768 = vmatprep.subr.bf16.mxu0 0
    %769 = vmatpush1.bf16.xpose.msra.mxu0 0
    %770 = vmatprep.mubr.bf16.mxu0 0
    %771 = vmatmul.mubr.bf16.gmra.mrb[0].mxu0 %v733
    %v772 = vpop.f32.mrb[0].mxu0
    %v773 = vadd.f32 %v104, %v772
    %v774 = vpop.f32.mrb[0].mxu0
    %v775 = vpop.f32.mrb[0].mxu0
    %v776 = vadd.f32 %v105, %v775
    %v777 = vpop.f32.mrb[0].mxu0
    %778 = vdwg.mxu0
    %v779 = vsel %vm263, %v773, -inf
    %780 = vmax.xlane.f32.xlu0 %v779
    %v781 = vpop.xlane.xlu0 %780
    %v782 = vsel %vm263, %v776, -inf
    %783 = vmax.xlane.f32.xlu0 %v782
    %v784 = vpop.xlane.xlu0 %783
    %v785 = vsub.f32 %v773, %v781
    %v786 = vsub.f32 %v776, %v784
    %v787 = vmul.f32 %v785, 1.442695
    %v788 = vpow.pop %v787
    %v789 = vmul.f32 %v786, 1.442695
    %v790 = vpow.pop %v789
    %v791 = vsel %vm263, %v788, 0.0
    %792 = vadd.xlane.f32.xlu0 %v791
    %v793 = vpop.xlane.xlu0 %792
    %v794 = vsel %vm263, %v790, 0.0
    %795 = vadd.xlane.f32.xlu0 %v794
    %v796 = vpop.xlane.xlu0 %795
    %v797 = vrcp.pop %v793
    %v798 = vrcp.pop %v796
    %v799 = vmul.f32 %v788, %v797
    %v800 = vmul.f32 %v790, %v798
    %v801 = vpack.c.bf16 %v800, %v799
    %802 = vrot.lane.b32.xlu0 %v211, 40
    %v803 = vpop.permute.xlu0 %802
    %v806 = vsel %vm263, %v801, 0
    %808 = vmatprep.subr.bf16.mxu0 0
    %809 = vmatpush1.bf16.msra.mxu0 %v803
    %810 = vmatprep.subr.bf16.mxu0 0
    %811 = vmatpush1.bf16.msra.mxu0 0
    %812 = vmatprep.subr.bf16.mxu0 0
    %813 = vmatpush1.bf16.msra.mxu0 0
    %814 = vmatprep.subr.bf16.mxu0 0
    %815 = vmatpush1.bf16.msra.mxu0 0
    %816 = vmatprep.subr.bf16.mxu0 0
    %817 = vmatpush1.bf16.msra.mxu0 0
    %818 = vmatprep.subr.bf16.mxu0 0
    %819 = vmatpush1.bf16.msra.mxu0 0
    %820 = vmatprep.subr.bf16.mxu0 0
    %821 = vmatpush1.bf16.msra.mxu0 0
    %822 = vmatprep.subr.bf16.mxu0 0
    %823 = vmatpush1.bf16.msra.mxu0 0
    %824 = vmatprep.subr.bf16.mxu0 0
    %825 = vmatpush1.bf16.msra.mxu0 0
    %826 = vmatprep.subr.bf16.mxu0 0
    %827 = vmatpush1.bf16.msra.mxu0 0
    %828 = vmatprep.subr.bf16.mxu0 0
    %829 = vmatpush1.bf16.msra.mxu0 0
    %830 = vmatprep.subr.bf16.mxu0 0
    %831 = vmatpush1.bf16.msra.mxu0 0
    %832 = vmatprep.subr.bf16.mxu0 0
    %833 = vmatpush1.bf16.msra.mxu0 0
    %834 = vmatprep.subr.bf16.mxu0 0
    %835 = vmatpush1.bf16.msra.mxu0 0
    %836 = vmatprep.subr.bf16.mxu0 0
    %837 = vmatpush1.bf16.msra.mxu0 0
    %838 = vmatprep.subr.bf16.mxu0 0
    %839 = vmatpush1.bf16.msra.mxu0 0
    %840 = vmatprep.mubr.bf16.mxu0 0
    %841 = vmatmul.mubr.bf16.gmra.mrb[0].mxu0 %v806
    %v842 = vpop.f32.mrb[0].mxu0
    %v843 = vadd.f32 0.0, %v842
    %v844 = vpop.f32.mrb[0].mxu0
    %v845 = vpop.f32.mrb[0].mxu0
    %v846 = vadd.f32 0.0, %v845
    %v847 = vpop.f32.mrb[0].mxu0
    %848 = vdwg.mxu0
    %v849 = vpack.c.bf16 %v846, %v843
    %s850 = scalar_lea.vmem %s3, 12
    %v851 = vld [vmem:[%s850] sm:$0xf]
    %v853 = vsel %vm215, %v849, 0
    %v856 = vsel %vm463, %v851, 0
    %858 = vmatprep.subr.bf16.mxu0 0
    %859 = vmatpush1.bf16.msra.mxu0 %v856
    %860 = vmatprep.subr.bf16.mxu0 0
    %861 = vmatpush1.bf16.msra.mxu0 0
    %862 = vmatprep.subr.bf16.mxu0 0
    %863 = vmatpush1.bf16.msra.mxu0 0
    %864 = vmatprep.subr.bf16.mxu0 0
    %865 = vmatpush1.bf16.msra.mxu0 0
    %866 = vmatprep.subr.bf16.mxu0 0
    %867 = vmatpush1.bf16.msra.mxu0 0
    %868 = vmatprep.subr.bf16.mxu0 0
    %869 = vmatpush1.bf16.msra.mxu0 0
    %870 = vmatprep.subr.bf16.mxu0 0
    %871 = vmatpush1.bf16.msra.mxu0 0
    %872 = vmatprep.subr.bf16.mxu0 0
    %873 = vmatpush1.bf16.msra.mxu0 0
    %874 = vmatprep.subr.bf16.mxu0 0
    %875 = vmatpush1.bf16.msra.mxu0 0
    %876 = vmatprep.subr.bf16.mxu0 0
    %877 = vmatpush1.bf16.msra.mxu0 0
    %878 = vmatprep.subr.bf16.mxu0 0
    %879 = vmatpush1.bf16.msra.mxu0 0
    %880 = vmatprep.subr.bf16.mxu0 0
    %881 = vmatpush1.bf16.msra.mxu0 0
    %882 = vmatprep.subr.bf16.mxu0 0
    %883 = vmatpush1.bf16.msra.mxu0 0
    %884 = vmatprep.subr.bf16.mxu0 0
    %885 = vmatpush1.bf16.msra.mxu0 0
    %886 = vmatprep.subr.bf16.mxu0 0
    %887 = vmatpush1.bf16.msra.mxu0 0
    %888 = vmatprep.subr.bf16.mxu0 0
    %889 = vmatpush1.bf16.msra.mxu0 0
    %890 = vmatprep.mubr.bf16.mxu0 0
    %891 = vmatmul.mubr.bf16.gmra.mrb[0].mxu0 %v853
    %v892 = vpop.f32.mrb[0].mxu0
    %v893 = vadd.f32 0.0, %v892
    %v894 = vpop.f32.mrb[0].mxu0
    %v895 = vpop.f32.mrb[0].mxu0
    %v896 = vadd.f32 0.0, %v895
    %v897 = vpop.f32.mrb[0].mxu0
    %898 = vdwg.mxu0
    %v899 = vadd.f32 %v726, %v893
    %v900 = vadd.f32 %v727, %v896
    %v901 = vadd.f32 %v51, %v899
    %v902 = vadd.f32 %v52, %v900
    %v903 = vlaneseq
    %v904 = vshrl.u32 %v903, 7
    %v905 = vsub.s32 0, %v904
    %v906 = vrot.slane %v56, %v905
    %v907 = vadd.f32 %v901, %v906
    %v908 = vadd.f32 %v902, %v906
    %v909 = vsel %vm106, %v907, 0.0
    %910 = vadd.xlane.f32.xlu0 %v909
    %v911 = vpop.xlane.xlu0 %910
    %v912 = vsel %vm106, %v908, 0.0
    %913 = vadd.xlane.f32.xlu0 %v912
    %v914 = vpop.xlane.xlu0 %913
    %v915 = vmul.f32 %v911, %v113
    %v916 = vmul.f32 %v914, %v113
    %v917 = vsub.f32 %v907, %v915
    %v918 = vsub.f32 %v908, %v916
    %v919 = vmul.f32 %v917, %v917
    %v920 = vmul.f32 %v918, %v918
    %v921 = vsel %vm106, %v919, 0.0
    %922 = vadd.xlane.f32.xlu0 %v921
    %v923 = vpop.xlane.xlu0 %922
    %v924 = vsel %vm106, %v920, 0.0
    %925 = vadd.xlane.f32.xlu0 %v924
    %v926 = vpop.xlane.xlu0 %925
    %v927 = vmul.f32 %v923, %v113
    %v928 = vmul.f32 %v926, %v113
    %v929 = vadd.f32 %v927, 1e-05
    %v930 = vadd.f32 %v928, 1e-05
    %v931 = vrsqrt.pop %v929
    %v932 = vrsqrt.pop %v930
    %v933 = vmul.f32 %v917, %v931
    %v934 = vmul.f32 %v918, %v932
    %v935 = vlaneseq
    %v936 = vshrl.u32 %v935, 7
    %v937 = vsub.s32 0, %v936
    %v938 = vrot.slane %v57, %v937
    %v939 = vmul.f32 %v933, %v938
    %v940 = vmul.f32 %v934, %v938
    %v941 = vlaneseq
    %v942 = vshrl.u32 %v941, 7
    %v943 = vsub.s32 0, %v942
    %v944 = vrot.slane %v58, %v943
    %v945 = vadd.f32 %v939, %v944
    %v946 = vadd.f32 %v940, %v944
    %v947 = vpack.c.bf16 %v946, %v945
    %v948 = vld [vmem:[#allocation5] sm:$0xf]
    %v949 = vld [vmem:[#allocation5 + $0x4] sm:$0xf]
    %v950 = vld [vmem:[#allocation5 + $0x8] sm:$0xf]
    %v951 = vld [vmem:[#allocation5 + $0xc] sm:$0xf]
    %v952 = vlaneseq
    %v953 = vshrl.u32 %v952, 7
    %v954 = vsub.s32 0, %v953
    %v955 = vrot.slane %v59, %v954
    %v960 = vunpack.c.l.b16 %v948
    %v961 = vunpack.c.l.b16 %v949
    %v962 = vunpack.c.l.b16 %v950
    %v963 = vunpack.c.l.b16 %v951
    %v964 = vpack.c.b16 %v961, %v960
    %v965 = vpack.c.b16 %v963, %v962
    %v969 = vsel %vm106, %v947, 0
    %971 = vmatprep.subr.bf16.mxu0 0
    %972 = vmatpush1.bf16.msra.mxu0 %v964
    %973 = vmatprep.subr.bf16.mxu0 0
    %974 = vmatpush1.bf16.msra.mxu0 %v965
    %975 = vmatprep.subr.bf16.mxu0 0
    %976 = vmatpush1.bf16.msra.mxu0 0
    %977 = vmatprep.subr.bf16.mxu0 0
    %978 = vmatpush1.bf16.msra.mxu0 0
    %979 = vmatprep.subr.bf16.mxu0 0
    %980 = vmatpush1.bf16.msra.mxu0 0
    %981 = vmatprep.subr.bf16.mxu0 0
    %982 = vmatpush1.bf16.msra.mxu0 0
    %983 = vmatprep.subr.bf16.mxu0 0
    %984 = vmatpush1.bf16.msra.mxu0 0
    %985 = vmatprep.subr.bf16.mxu0 0
    %986 = vmatpush1.bf16.msra.mxu0 0
    %987 = vmatprep.subr.bf16.mxu0 0
    %988 = vmatpush1.bf16.msra.mxu0 0
    %989 = vmatprep.subr.bf16.mxu0 0
    %990 = vmatpush1.bf16.msra.mxu0 0
    %991 = vmatprep.subr.bf16.mxu0 0
    %992 = vmatpush1.bf16.msra.mxu0 0
    %993 = vmatprep.subr.bf16.mxu0 0
    %994 = vmatpush1.bf16.msra.mxu0 0
    %995 = vmatprep.subr.bf16.mxu0 0
    %996 = vmatpush1.bf16.msra.mxu0 0
    %997 = vmatprep.subr.bf16.mxu0 0
    %998 = vmatpush1.bf16.msra.mxu0 0
    %999 = vmatprep.subr.bf16.mxu0 0
    %1000 = vmatpush1.bf16.msra.mxu0 0
    %1001 = vmatprep.subr.bf16.mxu0 0
    %1002 = vmatpush1.bf16.msra.mxu0 0
    %1003 = vmatprep.mubr.bf16.mxu0 0
    %1004 = vmatmul.mubr.bf16.gmra.mrb[0].mxu0 %v969
    %v1005 = vpop.f32.mrb[0].mxu0
    %v1006 = vadd.f32 %v955, %v1005
    %v1007 = vpop.f32.mrb[0].mxu0
    %v1008 = vpop.f32.mrb[0].mxu0
    %v1009 = vadd.f32 %v955, %v1008
    %v1010 = vpop.f32.mrb[0].mxu0
    %1011 = vdwg.mxu0
    %v1012 = vmul.f32 %v1006, 0.5
    %v1013 = vmul.f32 %v1009, 0.5
    %v1014 = vmul.f32 %v1006, 0.70710677
    %v1015 = vmul.f32 %v1009, 0.70710677
    %vm1016 = vcmp.ge.f32.partialorder %v1014, 0.0
    %vm1017 = vcmp.ge.f32.partialorder %v1015, 0.0
    %v1018 = vsel %vm1016, 1.0, -1.0
    %v1019 = vsel %vm1017, 1.0, -1.0
    %v1020 = vand.u32 2147483647, %v1014
    %v1021 = vand.u32 2147483647, %v1015
    %v1022 = vmul.f32 %v1020, 0.3275911
    %v1023 = vmul.f32 %v1021, 0.3275911
    %v1024 = vadd.f32 %v1022, 1.0
    %v1025 = vadd.f32 %v1023, 1.0
    %v1026 = vrcp.pop %v1024
    %v1027 = vrcp.pop %v1025
    %v1028 = vmul.f32 %v1026, 1.0614054
    %v1029 = vmul.f32 %v1027, 1.0614054
    %v1030 = vadd.f32 %v1028, -1.4531521
    %v1031 = vadd.f32 %v1029, -1.4531521
    %v1032 = vmul.f32 %v1030, %v1026
    %v1033 = vmul.f32 %v1031, %v1027
    %v1034 = vadd.f32 %v1032, 1.4214138
    %v1035 = vadd.f32 %v1033, 1.4214138
    %v1036 = vmul.f32 %v1034, %v1026
    %v1037 = vmul.f32 %v1035, %v1027
    %v1038 = vadd.f32 %v1036, -0.28449672
    %v1039 = vadd.f32 %v1037, -0.28449672
    %v1040 = vmul.f32 %v1038, %v1026
    %v1041 = vmul.f32 %v1039, %v1027
    %v1042 = vadd.f32 %v1040, 0.2548296
    %v1043 = vadd.f32 %v1041, 0.2548296
    %v1044 = vmul.f32 %v1042, %v1026
    %v1045 = vmul.f32 %v1043, %v1027
    %v1046 = vsub.f32 0.0, %v1020
    %v1047 = vsub.f32 0.0, %v1021
    %v1048 = vmul.f32 %v1046, %v1020
    %v1049 = vmul.f32 %v1047, %v1021
    %v1050 = vmul.f32 %v1048, 1.442695
    %v1051 = vpow.pop %v1050
    %v1052 = vmul.f32 %v1049, 1.442695
    %v1053 = vpow.pop %v1052
    %v1054 = vmul.f32 %v1044, %v1051
    %v1055 = vmul.f32 %v1045, %v1053
    %v1056 = vsub.f32 1.0, %v1054
    %v1057 = vsub.f32 1.0, %v1055
    %v1058 = vmul.f32 %v1018, %v1056
    %v1059 = vmul.f32 %v1019, %v1057
    %v1060 = vadd.f32 %v1058, 1.0
    %v1061 = vadd.f32 %v1059, 1.0
    %v1062 = vmul.f32 %v1012, %v1060
    %v1063 = vmul.f32 %v1013, %v1061
    %v1064 = vpack.c.bf16 %v1063, %v1062
    %v1065 = vld [vmem:[%s5] sm:$0xf]
    %v1066 = vld [vmem:[%s5 + $0x4] sm:$0xf]
    %v1067 = vld [vmem:[%s5 + $0x8] sm:$0xf]
    %v1068 = vld [vmem:[%s5 + $0xc] sm:$0xf]
    %v1069 = vld [vmem:[%s5 + $0x10] sm:$0xf]
    %v1070 = vld [vmem:[%s5 + $0x14] sm:$0xf]
    %v1071 = vld [vmem:[%s5 + $0x18] sm:$0xf]
    %v1072 = vld [vmem:[%s5 + $0x1c] sm:$0xf]
    %v1081 = vunpack.c.l.b16 %v1065
    %v1082 = vunpack.c.l.b16 %v1066
    %v1083 = vunpack.c.l.b16 %v1067
    %v1084 = vunpack.c.l.b16 %v1068
    %v1085 = vunpack.c.l.b16 %v1069
    %v1086 = vunpack.c.l.b16 %v1070
    %v1087 = vunpack.c.l.b16 %v1071
    %v1088 = vunpack.c.l.b16 %v1072
    %v1089 = vpack.c.b16 %v1082, %v1081
    %v1090 = vpack.c.b16 %v1084, %v1083
    %v1091 = vpack.c.b16 %v1086, %v1085
    %v1092 = vpack.c.b16 %v1088, %v1087
    %vm1097 = vcmask 523264
    %v1099 = vsel %vm1097, %v1064, 0
    %1101 = vmatprep.subr.bf16.mxu0 0
    %1102 = vmatpush1.bf16.msra.mxu0 %v1089
    %1103 = vmatprep.subr.bf16.mxu0 0
    %1104 = vmatpush1.bf16.msra.mxu0 %v1090
    %1105 = vmatprep.subr.bf16.mxu0 0
    %1106 = vmatpush1.bf16.msra.mxu0 %v1091
    %1107 = vmatprep.subr.bf16.mxu0 0
    %1108 = vmatpush1.bf16.msra.mxu0 %v1092
    %1109 = vmatprep.subr.bf16.mxu0 0
    %1110 = vmatpush1.bf16.msra.mxu0 0
    %1111 = vmatprep.subr.bf16.mxu0 0
    %1112 = vmatpush1.bf16.msra.mxu0 0
    %1113 = vmatprep.subr.bf16.mxu0 0
    %1114 = vmatpush1.bf16.msra.mxu0 0
    %1115 = vmatprep.subr.bf16.mxu0 0
    %1116 = vmatpush1.bf16.msra.mxu0 0
    %1117 = vmatprep.subr.bf16.mxu0 0
    %1118 = vmatpush1.bf16.msra.mxu0 0
    %1119 = vmatprep.subr.bf16.mxu0 0
    %1120 = vmatpush1.bf16.msra.mxu0 0
    %1121 = vmatprep.subr.bf16.mxu0 0
    %1122 = vmatpush1.bf16.msra.mxu0 0
    %1123 = vmatprep.subr.bf16.mxu0 0
    %1124 = vmatpush1.bf16.msra.mxu0 0
    %1125 = vmatprep.subr.bf16.mxu0 0
    %1126 = vmatpush1.bf16.msra.mxu0 0
    %1127 = vmatprep.subr.bf16.mxu0 0
    %1128 = vmatpush1.bf16.msra.mxu0 0
    %1129 = vmatprep.subr.bf16.mxu0 0
    %1130 = vmatpush1.bf16.msra.mxu0 0
    %1131 = vmatprep.subr.bf16.mxu0 0
    %1132 = vmatpush1.bf16.msra.mxu0 0
    %1133 = vmatprep.mubr.bf16.mxu0 0
    %1134 = vmatmul.mubr.bf16.gmra.mrb[0].mxu0 %v1099
    %v1135 = vpop.f32.mrb[0].mxu0
    %v1136 = vadd.f32 0.0, %v1135
    %v1137 = vpop.f32.mrb[0].mxu0
    %v1138 = vpop.f32.mrb[0].mxu0
    %v1139 = vadd.f32 0.0, %v1138
    %v1140 = vpop.f32.mrb[0].mxu0
    %1141 = vdwg.mxu0
    %v1142 = vadd.f32 %v907, %v1136
    %v1143 = vadd.f32 %v908, %v1139
    %v1144 = vlaneseq
    %v1145 = vshrl.u32 %v1144, 7
    %v1146 = vsub.s32 0, %v1145
    %v1147 = vrot.slane %v60, %v1146
    %v1148 = vadd.f32 %v1142, %v1147
    %v1149 = vadd.f32 %v1143, %v1147
    %1150 = vst.msk [vmem:[#allocation7] sm:$0xff] %vm106, %v1148
    %1151 = vst.msk [vmem:[#allocation7 + $0x8] sm:$0xff] %vm106, %v1149
    // Predicated region
    $region34: #{transformer_encoder_layer.1} parent=1 // pred_check
      _
    $region35: #{transformer_encoder_layer.1} parent=1 // pred_check_branch
      %1153 = sbr.rel (0) target = $region37
    $region36: #{transformer_encoder_layer.1} parent=1 // pred_region
      %s1155 = ssub.s32 256, 256
      %1156 = vsyncadd [#allocation4], %s1155
      %s1157 = sshll.u32 [#allocation7], 4
      %s1158 = int_to_ptr.vmem [resolvable:$true] %s1157
      %1163 = dma.vmem_to_hbm [thread:$0]  %s1158, 256, %s6, [#allocation4], 128, 128, 8
    $region37: #{transformer_encoder_layer.1} parent=1 // pred_fallthru
      _
    // Predicated region
    $region38: #{transformer_encoder_layer.1} parent=1 // pred_check
      _
    $region39: #{transformer_encoder_layer.1} parent=1 // pred_check_branch
      %1165 = sbr.rel (0) target = $region41
    $region40: #{transformer_encoder_layer.1} parent=1 // pred_region
      %1166 = dma.done [#allocation4], 256
    $region41: #{transformer_encoder_layer.1} parent=1 // pred_fallthru
      _
    %1167 = vsyncpa [#allocation3], 1
    %1168 = vsyncpa [#allocation6], 1
    %1169 = vsyncpa [#allocation4], 1

</llo_original>
